<compile_context>
chip_gen: v5e
topology: v5e:2x2
jax: 0.10.0
libtpu: 0.0.40
codegen_flags: <defaults>
</compile_context>

<pallas_src>
import jax
import jax.numpy as jnp
from jax.experimental import pallas as pl
from jax.experimental.pallas import tpu as pltpu


# ----------------------------------------------------------------------------
# Fused Pallas kernel: embedding lookup + BiLSTM + intent head + slot head
# ----------------------------------------------------------------------------
def _joint_kernel(ids_ref, emb_ref, wih_ref, whh_ref, b_ref,
                  wint_ref, bint_ref,
                  ws1_ref, wsc_ref, bs1_ref, ws2_ref, bs2_ref,
                  intent_ref, slot_ref,
                  yf_scr, yb_scr):
    T, BP, H = yf_scr.shape          # per-direction hidden H
    TB = T * BP
    G2 = 8 * H                       # combined gate width (both directions)
    Vp, D = emb_ref.shape
    F = ws1_ref.shape[1]

    bf16 = jnp.bfloat16

    # --- word_rep stand-in: embedding lookup as one-hot MXU matmul ----------
    ids = ids_ref[...]                                            # (TB, 1) i32
    onehot = jnp.where(
        ids == jax.lax.broadcasted_iota(jnp.int32, (TB, Vp), 1),
        1.0, 0.0).astype(bf16)                                    # (TB, Vp)
    x = jnp.dot(onehot, emb_ref[...],
                preferred_element_type=jnp.float32)               # (TB, D)

    # --- input projection hoisted out of the recurrence (one MXU push) ------
    xw = (jnp.dot(x.astype(bf16), wih_ref[...],
                  preferred_element_type=jnp.float32)
          + b_ref[...]).reshape(T, BP, G2)                        # (T, BP, 8H)

    # fwd/bwd gate columns are interleaved per gate: lane % 2H < H => forward.
    lane = jax.lax.broadcasted_iota(jnp.int32, (BP, G2), 1)
    is_fwd = (lane % (2 * H)) < H

    h = jnp.zeros((BP, 2 * H), jnp.float32)   # [h_fwd | h_bwd] combined state
    c = jnp.zeros((BP, 2 * H), jnp.float32)

    # --- fused fwd+bwd recurrence, fully unrolled (T is small & static) -----
    # (For large T this should become a lax.fori_loop with xw in scratch to
    #  bound vreg live ranges.)
    for t in range(T):
        # fwd gates read x[t], bwd gates read x[T-1-t]; this select does not
        # depend on h/c so it schedules off the serial critical path.
        xg = jnp.where(is_fwd, xw[t], xw[T - 1 - t])              # (BP, 8H)
        rec = jnp.dot(h.astype(bf16), whh_ref[...],
                      preferred_element_type=jnp.float32)         # (BP, 8H)
        gates = xg + rec
        sig = jax.nn.sigmoid(gates[:, :6 * H])      # i|f|o, both directions
        i_g = sig[:, 0:2 * H]
        f_g = sig[:, 2 * H:4 * H]
        o_g = sig[:, 4 * H:6 * H]
        g_g = jnp.tanh(gates[:, 6 * H:8 * H])
        c = f_g * c + i_g * g_g
        h = o_g * jnp.tanh(c)
        yf_scr[t] = h[:, :H]                        # forward output at t
        yb_scr[T - 1 - t] = h[:, H:]                # backward output at T-1-t

    # --- intent head: combined h == concat(h_fwd_final, h_bwd_final) --------
    intent = (jnp.dot(h.astype(bf16), wint_ref[...],
                      preferred_element_type=jnp.float32)
              + bint_ref[...])                                    # (BP, NIp)
    intent_ref[...] = intent.astype(intent_ref.dtype)             # lane-dense

    # --- slot head: split contraction (no lane-axis concatenates) -----------
    yf = yf_scr[...].reshape(TB, H).astype(bf16)
    yb = yb_scr[...].reshape(TB, H).astype(bf16)
    ctx = jnp.dot(intent.astype(bf16), wsc_ref[...],
                  preferred_element_type=jnp.float32)             # (BP, F)
    h1 = (jnp.dot(yf, ws1_ref[:H, :], preferred_element_type=jnp.float32)
          + jnp.dot(yb, ws1_ref[H:, :], preferred_element_type=jnp.float32)
          + bs1_ref[...]).reshape(T, BP, F) + ctx[None, :, :]
    h1 = jnp.maximum(h1, 0.0).reshape(TB, F)
    slot = (jnp.dot(h1.astype(bf16), ws2_ref[...],
                    preferred_element_type=jnp.float32)
            + bs2_ref[...])                                       # (TB, NSp)
    slot_ref[...] = slot.astype(slot_ref.dtype)                   # lane-dense


# ----------------------------------------------------------------------------
# Parameters (random init; a real checkpoint loader would permute PyTorch's
# per-direction (i,f,g,o) gate columns into this interleaved (i,f,o,g) fwd|bwd
# layout, fuse b_ih+b_hh, and transpose to (in, out)).
# ----------------------------------------------------------------------------
def init_params(key, vocab_size, lstm_input_size, hidden_dim, hidden_dim_ffw,
                num_intent_labels, num_slot_labels):
    H = hidden_dim // 2
    D = lstm_input_size
    ks = jax.random.split(key, 12)

    def w(k, shape, scale=0.1):
        return (scale * jax.random.normal(k, shape)).astype(jnp.float32)

    def interleave(wf, wb):
        # wf/wb: (..., 4H) with gate blocks [i, f, o, g] of width H ->
        # (..., 8H) with [i_f|i_b, f_f|f_b, o_f|o_b, g_f|g_b]
        parts = []
        for g in range(4):
            parts.append(wf[..., g * H:(g + 1) * H])
            parts.append(wb[..., g * H:(g + 1) * H])
        return jnp.concatenate(parts, axis=-1)

    w_ih_f, w_ih_b = w(ks[1], (D, 4 * H)), w(ks[4], (D, 4 * H))
    w_hh_f, w_hh_b = w(ks[2], (H, 4 * H)), w(ks[5], (H, 4 * H))
    b_f, b_b = w(ks[3], (1, 4 * H)), w(ks[6], (1, 4 * H))     # b_ih+b_hh fused

    zH = jnp.zeros((H, 4 * H), jnp.float32)
    # combined recurrent weight: rows [h_fwd | h_bwd]; per-gate block-diagonal
    whh = interleave(jnp.concatenate([w_hh_f, zH], axis=0),
                     jnp.concatenate([zH, w_hh_b], axis=0))       # (2H, 8H)

    return {
        "embedding": w(ks[0], (vocab_size, D)),
        "w_ih": interleave(w_ih_f, w_ih_b),                       # (D, 8H)
        "w_hh": whh,                                              # (2H, 8H)
        "b": interleave(b_f, b_b),                                # (1, 8H)
        # intent classifier: Linear(hidden_dim * lstm_layers, num_intent)
        "w_intent": w(ks[7], (hidden_dim, num_intent_labels)),
        "b_intent": w(ks[8], (1, num_intent_labels)),
        # slot classifier FFN
        "w_slot1": w(ks[9], (hidden_dim, hidden_dim_ffw)),
        "w_slot_ctx": w(ks[10], (num_intent_labels, hidden_dim_ffw)),
        "b_slot1": jnp.zeros((1, hidden_dim_ffw), jnp.float32),
        "w_slot2": w(ks[11], (hidden_dim_ffw, num_slot_labels)),
        "b_slot2": jnp.zeros((1, num_slot_labels), jnp.float32),
    }


# ----------------------------------------------------------------------------
# Forward wrapper
# ----------------------------------------------------------------------------
def joint_biaffine_forward(params, input_ids, attention_mask=None):
    del attention_mask                 # TODO(synk): see header note
    B, T = input_ids.shape
    V, D = params["embedding"].shape
    H2, NI = params["w_intent"].shape
    F = params["w_slot1"].shape[1]
    NS = params["w_slot2"].shape[1]
    H = H2 // 2
    BP = -(-B // 8) * 8                # batch padded to sublane width
    TB = T * BP
    NIp = -(-NI // 128) * 128          # lane-dense class dims
    NSp = -(-NS // 128) * 128
    Vp = -(-V // 8) * 8                # sublane-aligned vocab

    bf16 = jnp.bfloat16

    def pad_cols(a, n):
        return jnp.pad(a, ((0, 0), (0, n - a.shape[1])))

    def pad_rows(a, n):
        return jnp.pad(a, ((0, n - a.shape[0]), (0, 0)))

    # token ids, time-major, batch-padded, as a lane-1 column for the in-kernel
    # one-hot gather (padded rows reuse id 0; results are sliced off).
    ids_tm = jnp.pad(jnp.transpose(input_ids), ((0, 0), (0, BP - B)))
    ids = ids_tm.reshape(TB, 1).astype(jnp.int32)

    emb = pad_rows(params["embedding"], Vp).astype(bf16)
    w_ih = params["w_ih"].astype(bf16)
    w_hh = params["w_hh"].astype(bf16)
    b = params["b"]
    w_int = pad_cols(params["w_intent"], NIp).astype(bf16)
    b_int = pad_cols(params["b_intent"], NIp)
    ws1 = params["w_slot1"].astype(bf16)
    wsc = pad_rows(params["w_slot_ctx"], NIp).astype(bf16)
    bs1 = params["b_slot1"]
    ws2 = pad_cols(params["w_slot2"], NSp).astype(bf16)
    bs2 = pad_cols(params["b_slot2"], NSp)

    flops = (2 * TB * Vp * D              # one-hot embedding gather
             + 2 * TB * D * 8 * H         # input projection
             + T * 2 * BP * H2 * 8 * H    # recurrent matmuls
             + 2 * BP * H2 * NIp          # intent head
             + 2 * BP * NIp * F           # intent -> slot context
             + 2 * TB * H2 * F            # slot FFN layer 1 (split)
             + 2 * TB * F * NSp)          # slot FFN layer 2
    transcendentals = T * BP * 10 * H
    bytes_accessed = int(
        4 * TB + 4 * BP * NIp + 4 * TB * NSp
        + 2 * (emb.size + w_ih.size + w_hh.size + w_int.size
               + ws1.size + wsc.size + ws2.size)
        + 4 * (b.size + b_int.size + bs1.size + bs2.size))

    vmem = pl.BlockSpec(memory_space=pltpu.MemorySpace.VMEM)
    intent_pad, slot_pad = pl.pallas_call(
        _joint_kernel,
        out_shape=(jax.ShapeDtypeStruct((BP, NIp), jnp.float32),
                   jax.ShapeDtypeStruct((TB, NSp), jnp.float32)),
        in_specs=[vmem] * 12,
        out_specs=(vmem, vmem),
        scratch_shapes=[pltpu.VMEM((T, BP, H), jnp.float32),
                        pltpu.VMEM((T, BP, H), jnp.float32)],
        compiler_params=pltpu.CompilerParams(
            vmem_limit_bytes=32 * 1024 * 1024),
        cost_estimate=pl.CostEstimate(flops=flops,
                                      transcendentals=transcendentals,
                                      bytes_accessed=bytes_accessed),
    )(ids, emb, w_ih, w_hh, b,
      w_int, b_int,
      ws1, wsc, bs1, ws2, bs2)

    intent_output = intent_pad[:B, :NI]                           # (B, NI)
    slot_output = jnp.transpose(
        slot_pad.reshape(T, BP, NSp), (1, 0, 2))[:B, :, :NS]      # (B, T, NS)
    return intent_output, slot_output


# ----------------------------------------------------------------------------
if __name__ == "__main__":
    # Synthetic args: num_layer_bert=1, hidden_size=32, use_char=False,
    # hidden_dim=32, lstm_layers=1, hidden_dim_ffw=64,
    # num_intent_labels=7, num_slot_labels=9, use_attention=False, 'soft'.
    B, T = 2, 8
    vocab_size = 30
    lstm_input_size = 32
    hidden_dim = 32
    hidden_dim_ffw = 64
    num_intent_labels = 7
    num_slot_labels = 9

    key = jax.random.PRNGKey(0)
    k_params, k_ids = jax.random.split(key)
    params = init_params(k_params, vocab_size, lstm_input_size, hidden_dim,
                         hidden_dim_ffw, num_intent_labels, num_slot_labels)

    input_ids = jax.random.randint(k_ids, (B, T), 0, vocab_size, dtype=jnp.int32)
    attention_mask = jnp.ones((B, T), jnp.int32)

    intent_out, slot_out = jax.jit(joint_biaffine_forward)(
        params, input_ids, attention_mask)
    jax.block_until_ready((intent_out, slot_out))

    assert intent_out.shape == (B, num_intent_labels)
    assert slot_out.shape == (B, T, num_slot_labels)
    assert bool(jnp.all(jnp.isfinite(intent_out)))
    assert bool(jnp.all(jnp.isfinite(slot_out)))
    print("KERNEL_OK")
</pallas_src>

<mosaic_0001>
module attributes {stable_mosaic.version = 11 : i64} {
  func.func @_joint_kernel(%arg0: memref<64x1xi32, #tpu.memory_space<vmem>>, %arg1: memref<32x32xbf16, #tpu.memory_space<vmem>>, %arg2: memref<32x128xbf16, #tpu.memory_space<vmem>>, %arg3: memref<32x128xbf16, #tpu.memory_space<vmem>>, %arg4: memref<1x128xf32, #tpu.memory_space<vmem>>, %arg5: memref<32x128xbf16, #tpu.memory_space<vmem>>, %arg6: memref<1x128xf32, #tpu.memory_space<vmem>>, %arg7: memref<32x64xbf16, #tpu.memory_space<vmem>>, %arg8: memref<128x64xbf16, #tpu.memory_space<vmem>>, %arg9: memref<1x64xf32, #tpu.memory_space<vmem>>, %arg10: memref<64x128xbf16, #tpu.memory_space<vmem>>, %arg11: memref<1x128xf32, #tpu.memory_space<vmem>>, %arg12: memref<8x128xf32, #tpu.memory_space<vmem>>, %arg13: memref<64x128xf32, #tpu.memory_space<vmem>>, %arg14: memref<8x8x16xf32, #tpu.memory_space<vmem>>, %arg15: memref<8x8x16xf32, #tpu.memory_space<vmem>>) attributes {dimension_semantics = [], scalar_prefetch = 0 : i64, scratch_operands = 2 : i64, tpu.core_type = #tpu.core_type<tc>} {
    %c0 = arith.constant 0 : index
    %c0_0 = arith.constant 0 : index
    %0 = vector.load %arg0[%c0, %c0_0] : memref<64x1xi32, #tpu.memory_space<vmem>>, vector<64x1xi32>
    %1 = tpu.iota {dimensions = array<i32: 1>} : vector<64x32xi32>
    %2 = vector.broadcast %0 : vector<64x1xi32> to vector<64x32xi32>
    %3 = arith.cmpi eq, %2, %1 : vector<64x32xi32>
    %cst = arith.constant 1.000000e+00 : f32
    %cst_1 = arith.constant 0.000000e+00 : f32
    %4 = vector.broadcast %cst : f32 to vector<64x32xf32>
    %5 = vector.broadcast %cst_1 : f32 to vector<64x32xf32>
    %6 = arith.select %3, %4, %5 : vector<64x32xi1>, vector<64x32xf32>
    %7 = arith.truncf %6 : vector<64x32xf32> to vector<64x32xbf16>
    %c0_2 = arith.constant 0 : index
    %c0_3 = arith.constant 0 : index
    %8 = vector.load %arg1[%c0_2, %c0_3] : memref<32x32xbf16, #tpu.memory_space<vmem>>, vector<32x32xbf16>
    %cst_4 = arith.constant dense<0.000000e+00> : vector<64x32xf32>
    %9 = tpu.matmul %7, %8, %cst_4 {dimension_numbers = #tpu.dot_dimension_numbers<[1], [0], [0], [1], [0, 0, 1, 1], [], []>} : vector<64x32xbf16>, vector<32x32xbf16>, vector<64x32xf32> -> vector<64x32xf32>
    %10 = arith.truncf %9 : vector<64x32xf32> to vector<64x32xbf16>
    %c0_5 = arith.constant 0 : index
    %c0_6 = arith.constant 0 : index
    %11 = vector.load %arg2[%c0_5, %c0_6] : memref<32x128xbf16, #tpu.memory_space<vmem>>, vector<32x128xbf16>
    %cst_7 = arith.constant dense<0.000000e+00> : vector<64x128xf32>
    %12 = tpu.matmul %10, %11, %cst_7 {dimension_numbers = #tpu.dot_dimension_numbers<[1], [0], [0], [1], [0, 0, 1, 1], [], []>} : vector<64x32xbf16>, vector<32x128xbf16>, vector<64x128xf32> -> vector<64x128xf32>
    %c0_8 = arith.constant 0 : index
    %c0_9 = arith.constant 0 : index
    %13 = vector.load %arg4[%c0_8, %c0_9] : memref<1x128xf32, #tpu.memory_space<vmem>>, vector<1x128xf32>
    %14 = vector.broadcast %13 : vector<1x128xf32> to vector<64x128xf32>
    %15 = arith.addf %12, %14 : vector<64x128xf32>
    %16 = vector.shape_cast %15 : vector<64x128xf32> to vector<8x8x128xf32>
    %17 = tpu.iota {dimensions = array<i32: 1>} : vector<8x128xi32>
    %c32_i32 = arith.constant 32 : i32
    %c0_i32 = arith.constant 0 : i32
    %18 = arith.cmpi eq, %c32_i32, %c0_i32 : i32
    %c1_i32 = arith.constant 1 : i32
    %19 = arith.select %18, %c1_i32, %c32_i32 : i32
    %20 = vector.broadcast %19 : i32 to vector<8x128xi32>
    %21 = arith.remsi %17, %20 : vector<8x128xi32>
    %c0_i32_10 = arith.constant 0 : i32
    %22 = vector.broadcast %c0_i32_10 : i32 to vector<8x128xi32>
    %23 = arith.cmpi ne, %21, %22 : vector<8x128xi32>
    %c0_i32_11 = arith.constant 0 : i32
    %24 = vector.broadcast %c0_i32_11 : i32 to vector<8x128xi32>
    %25 = arith.cmpi slt, %21, %24 : vector<8x128xi32>
    %c0_i32_12 = arith.constant 0 : i32
    %26 = arith.cmpi slt, %19, %c0_i32_12 : i32
    %27 = vector.broadcast %26 : i1 to vector<8x128xi1>
    %28 = vector.broadcast %27 : vector<8x128xi1> to vector<8x128xi1>
    %29 = arith.xori %25, %28 : vector<8x128xi1>
    %30 = arith.andi %29, %23 : vector<8x128xi1>
    %31 = vector.broadcast %19 : i32 to vector<8x128xi32>
    %32 = arith.addi %21, %31 : vector<8x128xi32>
    %33 = arith.select %30, %32, %21 : vector<8x128xi1>, vector<8x128xi32>
    %c16_i32 = arith.constant 16 : i32
    %34 = vector.broadcast %c16_i32 : i32 to vector<8x128xi32>
    %35 = arith.cmpi slt, %33, %34 : vector<8x128xi32>
    %cst_13 = arith.constant 0.000000e+00 : f32
    %36 = vector.broadcast %cst_13 : f32 to vector<8x32xf32>
    %cst_14 = arith.constant 0.000000e+00 : f32
    %37 = vector.broadcast %cst_14 : f32 to vector<8x32xf32>
    %38 = vector.extract_strided_slice %16 {offsets = [0, 0, 0], sizes = [1, 8, 128], strides = [1, 1, 1]} : vector<8x8x128xf32> to vector<1x8x128xf32>
    %39 = vector.shape_cast %38 : vector<1x8x128xf32> to vector<8x128xf32>
    %40 = vector.extract_strided_slice %16 {offsets = [7, 0, 0], sizes = [1, 8, 128], strides = [1, 1, 1]} : vector<8x8x128xf32> to vector<1x8x128xf32>
    %41 = vector.shape_cast %40 : vector<1x8x128xf32> to vector<8x128xf32>
    %42 = arith.select %35, %39, %41 : vector<8x128xi1>, vector<8x128xf32>
    %43 = arith.truncf %36 : vector<8x32xf32> to vector<8x32xbf16>
    %c0_15 = arith.constant 0 : index
    %c0_16 = arith.constant 0 : index
    %44 = vector.load %arg3[%c0_15, %c0_16] : memref<32x128xbf16, #tpu.memory_space<vmem>>, vector<32x128xbf16>
    %cst_17 = arith.constant dense<0.000000e+00> : vector<8x128xf32>
    %45 = tpu.matmul %43, %44, %cst_17 {dimension_numbers = #tpu.dot_dimension_numbers<[1], [0], [0], [1], [0, 0, 1, 1], [], []>} : vector<8x32xbf16>, vector<32x128xbf16>, vector<8x128xf32> -> vector<8x128xf32>
    %46 = arith.addf %42, %45 : vector<8x128xf32>
    %47 = vector.extract_strided_slice %46 {offsets = [0, 0], sizes = [8, 96], strides = [1, 1]} : vector<8x128xf32> to vector<8x96xf32>
    %48 = arith.negf %47 : vector<8x96xf32>
    %49 = math.exp %48 : vector<8x96xf32>
    %cst_18 = arith.constant 1.000000e+00 : f32
    %50 = vector.broadcast %cst_18 : f32 to vector<8x96xf32>
    %51 = arith.addf %50, %49 : vector<8x96xf32>
    %52 = arith.divf %50, %51 : vector<8x96xf32>
    %53 = vector.extract_strided_slice %52 {offsets = [0, 0], sizes = [8, 32], strides = [1, 1]} : vector<8x96xf32> to vector<8x32xf32>
    %54 = vector.extract_strided_slice %52 {offsets = [0, 32], sizes = [8, 32], strides = [1, 1]} : vector<8x96xf32> to vector<8x32xf32>
    %55 = vector.extract_strided_slice %52 {offsets = [0, 64], sizes = [8, 32], strides = [1, 1]} : vector<8x96xf32> to vector<8x32xf32>
    %56 = vector.extract_strided_slice %46 {offsets = [0, 96], sizes = [8, 32], strides = [1, 1]} : vector<8x128xf32> to vector<8x32xf32>
    %57 = math.tanh %56 : vector<8x32xf32>
    %58 = arith.mulf %54, %37 : vector<8x32xf32>
    %59 = arith.mulf %53, %57 : vector<8x32xf32>
    %60 = arith.addf %58, %59 : vector<8x32xf32>
    %61 = math.tanh %60 : vector<8x32xf32>
    %62 = arith.mulf %55, %61 : vector<8x32xf32>
    %63 = vector.extract_strided_slice %62 {offsets = [0, 0], sizes = [8, 16], strides = [1, 1]} : vector<8x32xf32> to vector<8x16xf32>
    %c0_19 = arith.constant 0 : index
    %c0_20 = arith.constant 0 : index
    %c0_21 = arith.constant 0 : index
    %64 = vector.load %arg14[%c0_19, %c0_20, %c0_21] : memref<8x8x16xf32, #tpu.memory_space<vmem>>, vector<1x8x16xf32>
    %65 = vector.shape_cast %64 : vector<1x8x16xf32> to vector<8x16xf32>
    %66 = vector.shape_cast %63 : vector<8x16xf32> to vector<1x8x16xf32>
    tpu.vector_store %arg14[%c0_19, %c0_20, %c0_21], %66 {strides = array<i32>} : memref<8x8x16xf32, #tpu.memory_space<vmem>>, vector<1x8x16xf32>,
    %67 = vector.extract_strided_slice %62 {offsets = [0, 16], sizes = [8, 16], strides = [1, 1]} : vector<8x32xf32> to vector<8x16xf32>
    %c7 = arith.constant 7 : index
    %c0_22 = arith.constant 0 : index
    %c0_23 = arith.constant 0 : index
    %68 = vector.load %arg15[%c7, %c0_22, %c0_23] : memref<8x8x16xf32, #tpu.memory_space<vmem>>, vector<1x8x16xf32>
    %69 = vector.shape_cast %68 : vector<1x8x16xf32> to vector<8x16xf32>
    %70 = vector.shape_cast %67 : vector<8x16xf32> to vector<1x8x16xf32>
    tpu.vector_store %arg15[%c7, %c0_22, %c0_23], %70 {strides = array<i32>} : memref<8x8x16xf32, #tpu.memory_space<vmem>>, vector<1x8x16xf32>,
    %71 = vector.extract_strided_slice %16 {offsets = [1, 0, 0], sizes = [1, 8, 128], strides = [1, 1, 1]} : vector<8x8x128xf32> to vector<1x8x128xf32>
    %72 = vector.shape_cast %71 : vector<1x8x128xf32> to vector<8x128xf32>
    %73 = vector.extract_strided_slice %16 {offsets = [6, 0, 0], sizes = [1, 8, 128], strides = [1, 1, 1]} : vector<8x8x128xf32> to vector<1x8x128xf32>
    %74 = vector.shape_cast %73 : vector<1x8x128xf32> to vector<8x128xf32>
    %75 = arith.select %35, %72, %74 : vector<8x128xi1>, vector<8x128xf32>
    %76 = arith.truncf %62 : vector<8x32xf32> to vector<8x32xbf16>
    %c0_24 = arith.constant 0 : index
    %c0_25 = arith.constant 0 : index
    %77 = vector.load %arg3[%c0_24, %c0_25] : memref<32x128xbf16, #tpu.memory_space<vmem>>, vector<32x128xbf16>
    %cst_26 = arith.constant dense<0.000000e+00> : vector<8x128xf32>
    %78 = tpu.matmul %76, %77, %cst_26 {dimension_numbers = #tpu.dot_dimension_numbers<[1], [0], [0], [1], [0, 0, 1, 1], [], []>} : vector<8x32xbf16>, vector<32x128xbf16>, vector<8x128xf32> -> vector<8x128xf32>
    %79 = arith.addf %75, %78 : vector<8x128xf32>
    %80 = vector.extract_strided_slice %79 {offsets = [0, 0], sizes = [8, 96], strides = [1, 1]} : vector<8x128xf32> to vector<8x96xf32>
    %81 = arith.negf %80 : vector<8x96xf32>
    %82 = math.exp %81 : vector<8x96xf32>
    %cst_27 = arith.constant 1.000000e+00 : f32
    %83 = vector.broadcast %cst_27 : f32 to vector<8x96xf32>
    %84 = arith.addf %83, %82 : vector<8x96xf32>
    %85 = arith.divf %83, %84 : vector<8x96xf32>
    %86 = vector.extract_strided_slice %85 {offsets = [0, 0], sizes = [8, 32], strides = [1, 1]} : vector<8x96xf32> to vector<8x32xf32>
    %87 = vector.extract_strided_slice %85 {offsets = [0, 32], sizes = [8, 32], strides = [1, 1]} : vector<8x96xf32> to vector<8x32xf32>
    %88 = vector.extract_strided_slice %85 {offsets = [0, 64], sizes = [8, 32], strides = [1, 1]} : vector<8x96xf32> to vector<8x32xf32>
    %89 = vector.extract_strided_slice %79 {offsets = [0, 96], sizes = [8, 32], strides = [1, 1]} : vector<8x128xf32> to vector<8x32xf32>
    %90 = math.tanh %89 : vector<8x32xf32>
    %91 = arith.mulf %87, %60 : vector<8x32xf32>
    %92 = arith.mulf %86, %90 : vector<8x32xf32>
    %93 = arith.addf %91, %92 : vector<8x32xf32>
    %94 = math.tanh %93 : vector<8x32xf32>
    %95 = arith.mulf %88, %94 : vector<8x32xf32>
    %96 = vector.extract_strided_slice %95 {offsets = [0, 0], sizes = [8, 16], strides = [1, 1]} : vector<8x32xf32> to vector<8x16xf32>
    %c1 = arith.constant 1 : index
    %c0_28 = arith.constant 0 : index
    %c0_29 = arith.constant 0 : index
    %97 = vector.load %arg14[%c1, %c0_28, %c0_29] : memref<8x8x16xf32, #tpu.memory_space<vmem>>, vector<1x8x16xf32>
    %98 = vector.shape_cast %97 : vector<1x8x16xf32> to vector<8x16xf32>
    %99 = vector.shape_cast %96 : vector<8x16xf32> to vector<1x8x16xf32>
    tpu.vector_store %arg14[%c1, %c0_28, %c0_29], %99 {strides = array<i32>} : memref<8x8x16xf32, #tpu.memory_space<vmem>>, vector<1x8x16xf32>,
    %100 = vector.extract_strided_slice %95 {offsets = [0, 16], sizes = [8, 16], strides = [1, 1]} : vector<8x32xf32> to vector<8x16xf32>
    %c6 = arith.constant 6 : index
    %c0_30 = arith.constant 0 : index
    %c0_31 = arith.constant 0 : index
    %101 = vector.load %arg15[%c6, %c0_30, %c0_31] : memref<8x8x16xf32, #tpu.memory_space<vmem>>, vector<1x8x16xf32>
    %102 = vector.shape_cast %101 : vector<1x8x16xf32> to vector<8x16xf32>
    %103 = vector.shape_cast %100 : vector<8x16xf32> to vector<1x8x16xf32>
    tpu.vector_store %arg15[%c6, %c0_30, %c0_31], %103 {strides = array<i32>} : memref<8x8x16xf32, #tpu.memory_space<vmem>>, vector<1x8x16xf32>,
    %104 = vector.extract_strided_slice %16 {offsets = [2, 0, 0], sizes = [1, 8, 128], strides = [1, 1, 1]} : vector<8x8x128xf32> to vector<1x8x128xf32>
    %105 = vector.shape_cast %104 : vector<1x8x128xf32> to vector<8x128xf32>
    %106 = vector.extract_strided_slice %16 {offsets = [5, 0, 0], sizes = [1, 8, 128], strides = [1, 1, 1]} : vector<8x8x128xf32> to vector<1x8x128xf32>
    %107 = vector.shape_cast %106 : vector<1x8x128xf32> to vector<8x128xf32>
    %108 = arith.select %35, %105, %107 : vector<8x128xi1>, vector<8x128xf32>
    %109 = arith.truncf %95 : vector<8x32xf32> to vector<8x32xbf16>
    %c0_32 = arith.constant 0 : index
    %c0_33 = arith.constant 0 : index
    %110 = vector.load %arg3[%c0_32, %c0_33] : memref<32x128xbf16, #tpu.memory_space<vmem>>, vector<32x128xbf16>
    %cst_34 = arith.constant dense<0.000000e+00> : vector<8x128xf32>
    %111 = tpu.matmul %109, %110, %cst_34 {dimension_numbers = #tpu.dot_dimension_numbers<[1], [0], [0], [1], [0, 0, 1, 1], [], []>} : vector<8x32xbf16>, vector<32x128xbf16>, vector<8x128xf32> -> vector<8x128xf32>
    %112 = arith.addf %108, %111 : vector<8x128xf32>
    %113 = vector.extract_strided_slice %112 {offsets = [0, 0], sizes = [8, 96], strides = [1, 1]} : vector<8x128xf32> to vector<8x96xf32>
    %114 = arith.negf %113 : vector<8x96xf32>
    %115 = math.exp %114 : vector<8x96xf32>
    %cst_35 = arith.constant 1.000000e+00 : f32
    %116 = vector.broadcast %cst_35 : f32 to vector<8x96xf32>
    %117 = arith.addf %116, %115 : vector<8x96xf32>
    %118 = arith.divf %116, %117 : vector<8x96xf32>
    %119 = vector.extract_strided_slice %118 {offsets = [0, 0], sizes = [8, 32], strides = [1, 1]} : vector<8x96xf32> to vector<8x32xf32>
    %120 = vector.extract_strided_slice %118 {offsets = [0, 32], sizes = [8, 32], strides = [1, 1]} : vector<8x96xf32> to vector<8x32xf32>
    %121 = vector.extract_strided_slice %118 {offsets = [0, 64], sizes = [8, 32], strides = [1, 1]} : vector<8x96xf32> to vector<8x32xf32>
    %122 = vector.extract_strided_slice %112 {offsets = [0, 96], sizes = [8, 32], strides = [1, 1]} : vector<8x128xf32> to vector<8x32xf32>
    %123 = math.tanh %122 : vector<8x32xf32>
    %124 = arith.mulf %120, %93 : vector<8x32xf32>
    %125 = arith.mulf %119, %123 : vector<8x32xf32>
    %126 = arith.addf %124, %125 : vector<8x32xf32>
    %127 = math.tanh %126 : vector<8x32xf32>
    %128 = arith.mulf %121, %127 : vector<8x32xf32>
    %129 = vector.extract_strided_slice %128 {offsets = [0, 0], sizes = [8, 16], strides = [1, 1]} : vector<8x32xf32> to vector<8x16xf32>
    %c2 = arith.constant 2 : index
    %c0_36 = arith.constant 0 : index
    %c0_37 = arith.constant 0 : index
    %130 = vector.load %arg14[%c2, %c0_36, %c0_37] : memref<8x8x16xf32, #tpu.memory_space<vmem>>, vector<1x8x16xf32>
    %131 = vector.shape_cast %130 : vector<1x8x16xf32> to vector<8x16xf32>
    %132 = vector.shape_cast %129 : vector<8x16xf32> to vector<1x8x16xf32>
    tpu.vector_store %arg14[%c2, %c0_36, %c0_37], %132 {strides = array<i32>} : memref<8x8x16xf32, #tpu.memory_space<vmem>>, vector<1x8x16xf32>,
    %133 = vector.extract_strided_slice %128 {offsets = [0, 16], sizes = [8, 16], strides = [1, 1]} : vector<8x32xf32> to vector<8x16xf32>
    %c5 = arith.constant 5 : index
    %c0_38 = arith.constant 0 : index
    %c0_39 = arith.constant 0 : index
    %134 = vector.load %arg15[%c5, %c0_38, %c0_39] : memref<8x8x16xf32, #tpu.memory_space<vmem>>, vector<1x8x16xf32>
    %135 = vector.shape_cast %134 : vector<1x8x16xf32> to vector<8x16xf32>
    %136 = vector.shape_cast %133 : vector<8x16xf32> to vector<1x8x16xf32>
    tpu.vector_store %arg15[%c5, %c0_38, %c0_39], %136 {strides = array<i32>} : memref<8x8x16xf32, #tpu.memory_space<vmem>>, vector<1x8x16xf32>,
    %137 = vector.extract_strided_slice %16 {offsets = [3, 0, 0], sizes = [1, 8, 128], strides = [1, 1, 1]} : vector<8x8x128xf32> to vector<1x8x128xf32>
    %138 = vector.shape_cast %137 : vector<1x8x128xf32> to vector<8x128xf32>
    %139 = vector.extract_strided_slice %16 {offsets = [4, 0, 0], sizes = [1, 8, 128], strides = [1, 1, 1]} : vector<8x8x128xf32> to vector<1x8x128xf32>
    %140 = vector.shape_cast %139 : vector<1x8x128xf32> to vector<8x128xf32>
    %141 = arith.select %35, %138, %140 : vector<8x128xi1>, vector<8x128xf32>
    %142 = arith.truncf %128 : vector<8x32xf32> to vector<8x32xbf16>
    %c0_40 = arith.constant 0 : index
    %c0_41 = arith.constant 0 : index
    %143 = vector.load %arg3[%c0_40, %c0_41] : memref<32x128xbf16, #tpu.memory_space<vmem>>, vector<32x128xbf16>
    %cst_42 = arith.constant dense<0.000000e+00> : vector<8x128xf32>
    %144 = tpu.matmul %142, %143, %cst_42 {dimension_numbers = #tpu.dot_dimension_numbers<[1], [0], [0], [1], [0, 0, 1, 1], [], []>} : vector<8x32xbf16>, vector<32x128xbf16>, vector<8x128xf32> -> vector<8x128xf32>
    %145 = arith.addf %141, %144 : vector<8x128xf32>
    %146 = vector.extract_strided_slice %145 {offsets = [0, 0], sizes = [8, 96], strides = [1, 1]} : vector<8x128xf32> to vector<8x96xf32>
    %147 = arith.negf %146 : vector<8x96xf32>
    %148 = math.exp %147 : vector<8x96xf32>
    %cst_43 = arith.constant 1.000000e+00 : f32
    %149 = vector.broadcast %cst_43 : f32 to vector<8x96xf32>
    %150 = arith.addf %149, %148 : vector<8x96xf32>
    %151 = arith.divf %149, %150 : vector<8x96xf32>
    %152 = vector.extract_strided_slice %151 {offsets = [0, 0], sizes = [8, 32], strides = [1, 1]} : vector<8x96xf32> to vector<8x32xf32>
    %153 = vector.extract_strided_slice %151 {offsets = [0, 32], sizes = [8, 32], strides = [1, 1]} : vector<8x96xf32> to vector<8x32xf32>
    %154 = vector.extract_strided_slice %151 {offsets = [0, 64], sizes = [8, 32], strides = [1, 1]} : vector<8x96xf32> to vector<8x32xf32>
    %155 = vector.extract_strided_slice %145 {offsets = [0, 96], sizes = [8, 32], strides = [1, 1]} : vector<8x128xf32> to vector<8x32xf32>
    %156 = math.tanh %155 : vector<8x32xf32>
    %157 = arith.mulf %153, %126 : vector<8x32xf32>
    %158 = arith.mulf %152, %156 : vector<8x32xf32>
    %159 = arith.addf %157, %158 : vector<8x32xf32>
    %160 = math.tanh %159 : vector<8x32xf32>
    %161 = arith.mulf %154, %160 : vector<8x32xf32>
    %162 = vector.extract_strided_slice %161 {offsets = [0, 0], sizes = [8, 16], strides = [1, 1]} : vector<8x32xf32> to vector<8x16xf32>
    %c3 = arith.constant 3 : index
    %c0_44 = arith.constant 0 : index
    %c0_45 = arith.constant 0 : index
    %163 = vector.load %arg14[%c3, %c0_44, %c0_45] : memref<8x8x16xf32, #tpu.memory_space<vmem>>, vector<1x8x16xf32>
    %164 = vector.shape_cast %163 : vector<1x8x16xf32> to vector<8x16xf32>
    %165 = vector.shape_cast %162 : vector<8x16xf32> to vector<1x8x16xf32>
    tpu.vector_store %arg14[%c3, %c0_44, %c0_45], %165 {strides = array<i32>} : memref<8x8x16xf32, #tpu.memory_space<vmem>>, vector<1x8x16xf32>,
    %166 = vector.extract_strided_slice %161 {offsets = [0, 16], sizes = [8, 16], strides = [1, 1]} : vector<8x32xf32> to vector<8x16xf32>
    %c4 = arith.constant 4 : index
    %c0_46 = arith.constant 0 : index
    %c0_47 = arith.constant 0 : index
    %167 = vector.load %arg15[%c4, %c0_46, %c0_47] : memref<8x8x16xf32, #tpu.memory_space<vmem>>, vector<1x8x16xf32>
    %168 = vector.shape_cast %167 : vector<1x8x16xf32> to vector<8x16xf32>
    %169 = vector.shape_cast %166 : vector<8x16xf32> to vector<1x8x16xf32>
    tpu.vector_store %arg15[%c4, %c0_46, %c0_47], %169 {strides = array<i32>} : memref<8x8x16xf32, #tpu.memory_space<vmem>>, vector<1x8x16xf32>,
    %170 = vector.extract_strided_slice %16 {offsets = [4, 0, 0], sizes = [1, 8, 128], strides = [1, 1, 1]} : vector<8x8x128xf32> to vector<1x8x128xf32>
    %171 = vector.shape_cast %170 : vector<1x8x128xf32> to vector<8x128xf32>
    %172 = vector.extract_strided_slice %16 {offsets = [3, 0, 0], sizes = [1, 8, 128], strides = [1, 1, 1]} : vector<8x8x128xf32> to vector<1x8x128xf32>
    %173 = vector.shape_cast %172 : vector<1x8x128xf32> to vector<8x128xf32>
    %174 = arith.select %35, %171, %173 : vector<8x128xi1>, vector<8x128xf32>
    %175 = arith.truncf %161 : vector<8x32xf32> to vector<8x32xbf16>
    %c0_48 = arith.constant 0 : index
    %c0_49 = arith.constant 0 : index
    %176 = vector.load %arg3[%c0_48, %c0_49] : memref<32x128xbf16, #tpu.memory_space<vmem>>, vector<32x128xbf16>
    %cst_50 = arith.constant dense<0.000000e+00> : vector<8x128xf32>
    %177 = tpu.matmul %175, %176, %cst_50 {dimension_numbers = #tpu.dot_dimension_numbers<[1], [0], [0], [1], [0, 0, 1, 1], [], []>} : vector<8x32xbf16>, vector<32x128xbf16>, vector<8x128xf32> -> vector<8x128xf32>
    %178 = arith.addf %174, %177 : vector<8x128xf32>
    %179 = vector.extract_strided_slice %178 {offsets = [0, 0], sizes = [8, 96], strides = [1, 1]} : vector<8x128xf32> to vector<8x96xf32>
    %180 = arith.negf %179 : vector<8x96xf32>
    %181 = math.exp %180 : vector<8x96xf32>
    %cst_51 = arith.constant 1.000000e+00 : f32
    %182 = vector.broadcast %cst_51 : f32 to vector<8x96xf32>
    %183 = arith.addf %182, %181 : vector<8x96xf32>
    %184 = arith.divf %182, %183 : vector<8x96xf32>
    %185 = vector.extract_strided_slice %184 {offsets = [0, 0], sizes = [8, 32], strides = [1, 1]} : vector<8x96xf32> to vector<8x32xf32>
    %186 = vector.extract_strided_slice %184 {offsets = [0, 32], sizes = [8, 32], strides = [1, 1]} : vector<8x96xf32> to vector<8x32xf32>
    %187 = vector.extract_strided_slice %184 {offsets = [0, 64], sizes = [8, 32], strides = [1, 1]} : vector<8x96xf32> to vector<8x32xf32>
    %188 = vector.extract_strided_slice %178 {offsets = [0, 96], sizes = [8, 32], strides = [1, 1]} : vector<8x128xf32> to vector<8x32xf32>
    %189 = math.tanh %188 : vector<8x32xf32>
    %190 = arith.mulf %186, %159 : vector<8x32xf32>
    %191 = arith.mulf %185, %189 : vector<8x32xf32>
    %192 = arith.addf %190, %191 : vector<8x32xf32>
    %193 = math.tanh %192 : vector<8x32xf32>
    %194 = arith.mulf %187, %193 : vector<8x32xf32>
    %195 = vector.extract_strided_slice %194 {offsets = [0, 0], sizes = [8, 16], strides = [1, 1]} : vector<8x32xf32> to vector<8x16xf32>
    %c4_52 = arith.constant 4 : index
    %c0_53 = arith.constant 0 : index
    %c0_54 = arith.constant 0 : index
    %196 = vector.load %arg14[%c4_52, %c0_53, %c0_54] : memref<8x8x16xf32, #tpu.memory_space<vmem>>, vector<1x8x16xf32>
    %197 = vector.shape_cast %196 : vector<1x8x16xf32> to vector<8x16xf32>
    %198 = vector.shape_cast %195 : vector<8x16xf32> to vector<1x8x16xf32>
    tpu.vector_store %arg14[%c4_52, %c0_53, %c0_54], %198 {strides = array<i32>} : memref<8x8x16xf32, #tpu.memory_space<vmem>>, vector<1x8x16xf32>,
    %199 = vector.extract_strided_slice %194 {offsets = [0, 16], sizes = [8, 16], strides = [1, 1]} : vector<8x32xf32> to vector<8x16xf32>
    %c3_55 = arith.constant 3 : index
    %c0_56 = arith.constant 0 : index
    %c0_57 = arith.constant 0 : index
    %200 = vector.load %arg15[%c3_55, %c0_56, %c0_57] : memref<8x8x16xf32, #tpu.memory_space<vmem>>, vector<1x8x16xf32>
    %201 = vector.shape_cast %200 : vector<1x8x16xf32> to vector<8x16xf32>
    %202 = vector.shape_cast %199 : vector<8x16xf32> to vector<1x8x16xf32>
    tpu.vector_store %arg15[%c3_55, %c0_56, %c0_57], %202 {strides = array<i32>} : memref<8x8x16xf32, #tpu.memory_space<vmem>>, vector<1x8x16xf32>,
    %203 = vector.extract_strided_slice %16 {offsets = [5, 0, 0], sizes = [1, 8, 128], strides = [1, 1, 1]} : vector<8x8x128xf32> to vector<1x8x128xf32>
    %204 = vector.shape_cast %203 : vector<1x8x128xf32> to vector<8x128xf32>
    %205 = vector.extract_strided_slice %16 {offsets = [2, 0, 0], sizes = [1, 8, 128], strides = [1, 1, 1]} : vector<8x8x128xf32> to vector<1x8x128xf32>
    %206 = vector.shape_cast %205 : vector<1x8x128xf32> to vector<8x128xf32>
    %207 = arith.select %35, %204, %206 : vector<8x128xi1>, vector<8x128xf32>
    %208 = arith.truncf %194 : vector<8x32xf32> to vector<8x32xbf16>
    %c0_58 = arith.constant 0 : index
    %c0_59 = arith.constant 0 : index
    %209 = vector.load %arg3[%c0_58, %c0_59] : memref<32x128xbf16, #tpu.memory_space<vmem>>, vector<32x128xbf16>
    %cst_60 = arith.constant dense<0.000000e+00> : vector<8x128xf32>
    %210 = tpu.matmul %208, %209, %cst_60 {dimension_numbers = #tpu.dot_dimension_numbers<[1], [0], [0], [1], [0, 0, 1, 1], [], []>} : vector<8x32xbf16>, vector<32x128xbf16>, vector<8x128xf32> -> vector<8x128xf32>
    %211 = arith.addf %207, %210 : vector<8x128xf32>
    %212 = vector.extract_strided_slice %211 {offsets = [0, 0], sizes = [8, 96], strides = [1, 1]} : vector<8x128xf32> to vector<8x96xf32>
    %213 = arith.negf %212 : vector<8x96xf32>
    %214 = math.exp %213 : vector<8x96xf32>
    %cst_61 = arith.constant 1.000000e+00 : f32
    %215 = vector.broadcast %cst_61 : f32 to vector<8x96xf32>
    %216 = arith.addf %215, %214 : vector<8x96xf32>
    %217 = arith.divf %215, %216 : vector<8x96xf32>
    %218 = vector.extract_strided_slice %217 {offsets = [0, 0], sizes = [8, 32], strides = [1, 1]} : vector<8x96xf32> to vector<8x32xf32>
    %219 = vector.extract_strided_slice %217 {offsets = [0, 32], sizes = [8, 32], strides = [1, 1]} : vector<8x96xf32> to vector<8x32xf32>
    %220 = vector.extract_strided_slice %217 {offsets = [0, 64], sizes = [8, 32], strides = [1, 1]} : vector<8x96xf32> to vector<8x32xf32>
    %221 = vector.extract_strided_slice %211 {offsets = [0, 96], sizes = [8, 32], strides = [1, 1]} : vector<8x128xf32> to vector<8x32xf32>
    %222 = math.tanh %221 : vector<8x32xf32>
    %223 = arith.mulf %219, %192 : vector<8x32xf32>
    %224 = arith.mulf %218, %222 : vector<8x32xf32>
    %225 = arith.addf %223, %224 : vector<8x32xf32>
    %226 = math.tanh %225 : vector<8x32xf32>
    %227 = arith.mulf %220, %226 : vector<8x32xf32>
    %228 = vector.extract_strided_slice %227 {offsets = [0, 0], sizes = [8, 16], strides = [1, 1]} : vector<8x32xf32> to vector<8x16xf32>
    %c5_62 = arith.constant 5 : index
    %c0_63 = arith.constant 0 : index
    %c0_64 = arith.constant 0 : index
    %229 = vector.load %arg14[%c5_62, %c0_63, %c0_64] : memref<8x8x16xf32, #tpu.memory_space<vmem>>, vector<1x8x16xf32>
    %230 = vector.shape_cast %229 : vector<1x8x16xf32> to vector<8x16xf32>
    %231 = vector.shape_cast %228 : vector<8x16xf32> to vector<1x8x16xf32>
    tpu.vector_store %arg14[%c5_62, %c0_63, %c0_64], %231 {strides = array<i32>} : memref<8x8x16xf32, #tpu.memory_space<vmem>>, vector<1x8x16xf32>,
    %232 = vector.extract_strided_slice %227 {offsets = [0, 16], sizes = [8, 16], strides = [1, 1]} : vector<8x32xf32> to vector<8x16xf32>
    %c2_65 = arith.constant 2 : index
    %c0_66 = arith.constant 0 : index
    %c0_67 = arith.constant 0 : index
    %233 = vector.load %arg15[%c2_65, %c0_66, %c0_67] : memref<8x8x16xf32, #tpu.memory_space<vmem>>, vector<1x8x16xf32>
    %234 = vector.shape_cast %233 : vector<1x8x16xf32> to vector<8x16xf32>
    %235 = vector.shape_cast %232 : vector<8x16xf32> to vector<1x8x16xf32>
    tpu.vector_store %arg15[%c2_65, %c0_66, %c0_67], %235 {strides = array<i32>} : memref<8x8x16xf32, #tpu.memory_space<vmem>>, vector<1x8x16xf32>,
    %236 = vector.extract_strided_slice %16 {offsets = [6, 0, 0], sizes = [1, 8, 128], strides = [1, 1, 1]} : vector<8x8x128xf32> to vector<1x8x128xf32>
    %237 = vector.shape_cast %236 : vector<1x8x128xf32> to vector<8x128xf32>
    %238 = vector.extract_strided_slice %16 {offsets = [1, 0, 0], sizes = [1, 8, 128], strides = [1, 1, 1]} : vector<8x8x128xf32> to vector<1x8x128xf32>
    %239 = vector.shape_cast %238 : vector<1x8x128xf32> to vector<8x128xf32>
    %240 = arith.select %35, %237, %239 : vector<8x128xi1>, vector<8x128xf32>
    %241 = arith.truncf %227 : vector<8x32xf32> to vector<8x32xbf16>
    %c0_68 = arith.constant 0 : index
    %c0_69 = arith.constant 0 : index
    %242 = vector.load %arg3[%c0_68, %c0_69] : memref<32x128xbf16, #tpu.memory_space<vmem>>, vector<32x128xbf16>
    %cst_70 = arith.constant dense<0.000000e+00> : vector<8x128xf32>
    %243 = tpu.matmul %241, %242, %cst_70 {dimension_numbers = #tpu.dot_dimension_numbers<[1], [0], [0], [1], [0, 0, 1, 1], [], []>} : vector<8x32xbf16>, vector<32x128xbf16>, vector<8x128xf32> -> vector<8x128xf32>
    %244 = arith.addf %240, %243 : vector<8x128xf32>
    %245 = vector.extract_strided_slice %244 {offsets = [0, 0], sizes = [8, 96], strides = [1, 1]} : vector<8x128xf32> to vector<8x96xf32>
    %246 = arith.negf %245 : vector<8x96xf32>
    %247 = math.exp %246 : vector<8x96xf32>
    %cst_71 = arith.constant 1.000000e+00 : f32
    %248 = vector.broadcast %cst_71 : f32 to vector<8x96xf32>
    %249 = arith.addf %248, %247 : vector<8x96xf32>
    %250 = arith.divf %248, %249 : vector<8x96xf32>
    %251 = vector.extract_strided_slice %250 {offsets = [0, 0], sizes = [8, 32], strides = [1, 1]} : vector<8x96xf32> to vector<8x32xf32>
    %252 = vector.extract_strided_slice %250 {offsets = [0, 32], sizes = [8, 32], strides = [1, 1]} : vector<8x96xf32> to vector<8x32xf32>
    %253 = vector.extract_strided_slice %250 {offsets = [0, 64], sizes = [8, 32], strides = [1, 1]} : vector<8x96xf32> to vector<8x32xf32>
    %254 = vector.extract_strided_slice %244 {offsets = [0, 96], sizes = [8, 32], strides = [1, 1]} : vector<8x128xf32> to vector<8x32xf32>
    %255 = math.tanh %254 : vector<8x32xf32>
    %256 = arith.mulf %252, %225 : vector<8x32xf32>
    %257 = arith.mulf %251, %255 : vector<8x32xf32>
    %258 = arith.addf %256, %257 : vector<8x32xf32>
    %259 = math.tanh %258 : vector<8x32xf32>
    %260 = arith.mulf %253, %259 : vector<8x32xf32>
    %261 = vector.extract_strided_slice %260 {offsets = [0, 0], sizes = [8, 16], strides = [1, 1]} : vector<8x32xf32> to vector<8x16xf32>
    %c6_72 = arith.constant 6 : index
    %c0_73 = arith.constant 0 : index
    %c0_74 = arith.constant 0 : index
    %262 = vector.load %arg14[%c6_72, %c0_73, %c0_74] : memref<8x8x16xf32, #tpu.memory_space<vmem>>, vector<1x8x16xf32>
    %263 = vector.shape_cast %262 : vector<1x8x16xf32> to vector<8x16xf32>
    %264 = vector.shape_cast %261 : vector<8x16xf32> to vector<1x8x16xf32>
    tpu.vector_store %arg14[%c6_72, %c0_73, %c0_74], %264 {strides = array<i32>} : memref<8x8x16xf32, #tpu.memory_space<vmem>>, vector<1x8x16xf32>,
    %265 = vector.extract_strided_slice %260 {offsets = [0, 16], sizes = [8, 16], strides = [1, 1]} : vector<8x32xf32> to vector<8x16xf32>
    %c1_75 = arith.constant 1 : index
    %c0_76 = arith.constant 0 : index
    %c0_77 = arith.constant 0 : index
    %266 = vector.load %arg15[%c1_75, %c0_76, %c0_77] : memref<8x8x16xf32, #tpu.memory_space<vmem>>, vector<1x8x16xf32>
    %267 = vector.shape_cast %266 : vector<1x8x16xf32> to vector<8x16xf32>
    %268 = vector.shape_cast %265 : vector<8x16xf32> to vector<1x8x16xf32>
    tpu.vector_store %arg15[%c1_75, %c0_76, %c0_77], %268 {strides = array<i32>} : memref<8x8x16xf32, #tpu.memory_space<vmem>>, vector<1x8x16xf32>,
    %269 = vector.extract_strided_slice %16 {offsets = [7, 0, 0], sizes = [1, 8, 128], strides = [1, 1, 1]} : vector<8x8x128xf32> to vector<1x8x128xf32>
    %270 = vector.shape_cast %269 : vector<1x8x128xf32> to vector<8x128xf32>
    %271 = vector.extract_strided_slice %16 {offsets = [0, 0, 0], sizes = [1, 8, 128], strides = [1, 1, 1]} : vector<8x8x128xf32> to vector<1x8x128xf32>
    %272 = vector.shape_cast %271 : vector<1x8x128xf32> to vector<8x128xf32>
    %273 = arith.select %35, %270, %272 : vector<8x128xi1>, vector<8x128xf32>
    %274 = arith.truncf %260 : vector<8x32xf32> to vector<8x32xbf16>
    %c0_78 = arith.constant 0 : index
    %c0_79 = arith.constant 0 : index
    %275 = vector.load %arg3[%c0_78, %c0_79] : memref<32x128xbf16, #tpu.memory_space<vmem>>, vector<32x128xbf16>
    %cst_80 = arith.constant dense<0.000000e+00> : vector<8x128xf32>
    %276 = tpu.matmul %274, %275, %cst_80 {dimension_numbers = #tpu.dot_dimension_numbers<[1], [0], [0], [1], [0, 0, 1, 1], [], []>} : vector<8x32xbf16>, vector<32x128xbf16>, vector<8x128xf32> -> vector<8x128xf32>
    %277 = arith.addf %273, %276 : vector<8x128xf32>
    %278 = vector.extract_strided_slice %277 {offsets = [0, 0], sizes = [8, 96], strides = [1, 1]} : vector<8x128xf32> to vector<8x96xf32>
    %279 = arith.negf %278 : vector<8x96xf32>
    %280 = math.exp %279 : vector<8x96xf32>
    %cst_81 = arith.constant 1.000000e+00 : f32
    %281 = vector.broadcast %cst_81 : f32 to vector<8x96xf32>
    %282 = arith.addf %281, %280 : vector<8x96xf32>
    %283 = arith.divf %281, %282 : vector<8x96xf32>
    %284 = vector.extract_strided_slice %283 {offsets = [0, 0], sizes = [8, 32], strides = [1, 1]} : vector<8x96xf32> to vector<8x32xf32>
    %285 = vector.extract_strided_slice %283 {offsets = [0, 32], sizes = [8, 32], strides = [1, 1]} : vector<8x96xf32> to vector<8x32xf32>
    %286 = vector.extract_strided_slice %283 {offsets = [0, 64], sizes = [8, 32], strides = [1, 1]} : vector<8x96xf32> to vector<8x32xf32>
    %287 = vector.extract_strided_slice %277 {offsets = [0, 96], sizes = [8, 32], strides = [1, 1]} : vector<8x128xf32> to vector<8x32xf32>
    %288 = math.tanh %287 : vector<8x32xf32>
    %289 = arith.mulf %285, %258 : vector<8x32xf32>
    %290 = arith.mulf %284, %288 : vector<8x32xf32>
    %291 = arith.addf %289, %290 : vector<8x32xf32>
    %292 = math.tanh %291 : vector<8x32xf32>
    %293 = arith.mulf %286, %292 : vector<8x32xf32>
    %294 = vector.extract_strided_slice %293 {offsets = [0, 0], sizes = [8, 16], strides = [1, 1]} : vector<8x32xf32> to vector<8x16xf32>
    %c7_82 = arith.constant 7 : index
    %c0_83 = arith.constant 0 : index
    %c0_84 = arith.constant 0 : index
    %295 = vector.load %arg14[%c7_82, %c0_83, %c0_84] : memref<8x8x16xf32, #tpu.memory_space<vmem>>, vector<1x8x16xf32>
    %296 = vector.shape_cast %295 : vector<1x8x16xf32> to vector<8x16xf32>
    %297 = vector.shape_cast %294 : vector<8x16xf32> to vector<1x8x16xf32>
    tpu.vector_store %arg14[%c7_82, %c0_83, %c0_84], %297 {strides = array<i32>} : memref<8x8x16xf32, #tpu.memory_space<vmem>>, vector<1x8x16xf32>,
    %298 = vector.extract_strided_slice %293 {offsets = [0, 16], sizes = [8, 16], strides = [1, 1]} : vector<8x32xf32> to vector<8x16xf32>
    %c0_85 = arith.constant 0 : index
    %c0_86 = arith.constant 0 : index
    %c0_87 = arith.constant 0 : index
    %299 = vector.load %arg15[%c0_85, %c0_86, %c0_87] : memref<8x8x16xf32, #tpu.memory_space<vmem>>, vector<1x8x16xf32>
    %300 = vector.shape_cast %299 : vector<1x8x16xf32> to vector<8x16xf32>
    %301 = vector.shape_cast %298 : vector<8x16xf32> to vector<1x8x16xf32>
    tpu.vector_store %arg15[%c0_85, %c0_86, %c0_87], %301 {strides = array<i32>} : memref<8x8x16xf32, #tpu.memory_space<vmem>>, vector<1x8x16xf32>,
    %302 = arith.truncf %293 : vector<8x32xf32> to vector<8x32xbf16>
    %c0_88 = arith.constant 0 : index
    %c0_89 = arith.constant 0 : index
    %303 = vector.load %arg5[%c0_88, %c0_89] : memref<32x128xbf16, #tpu.memory_space<vmem>>, vector<32x128xbf16>
    %cst_90 = arith.constant dense<0.000000e+00> : vector<8x128xf32>
    %304 = tpu.matmul %302, %303, %cst_90 {dimension_numbers = #tpu.dot_dimension_numbers<[1], [0], [0], [1], [0, 0, 1, 1], [], []>} : vector<8x32xbf16>, vector<32x128xbf16>, vector<8x128xf32> -> vector<8x128xf32>
    %c0_91 = arith.constant 0 : index
    %c0_92 = arith.constant 0 : index
    %305 = vector.load %arg6[%c0_91, %c0_92] : memref<1x128xf32, #tpu.memory_space<vmem>>, vector<1x128xf32>
    %306 = vector.broadcast %305 : vector<1x128xf32> to vector<8x128xf32>
    %307 = arith.addf %304, %306 : vector<8x128xf32>
    %c0_93 = arith.constant 0 : index
    %c0_94 = arith.constant 0 : index
    %308 = vector.load %arg12[%c0_93, %c0_94] : memref<8x128xf32, #tpu.memory_space<vmem>>, vector<8x128xf32>
    tpu.vector_store %arg12[%c0_93, %c0_94], %307 {strides = array<i32>} : memref<8x128xf32, #tpu.memory_space<vmem>>, vector<8x128xf32>,
    %c0_95 = arith.constant 0 : index
    %c0_96 = arith.constant 0 : index
    %c0_97 = arith.constant 0 : index
    %309 = vector.load %arg14[%c0_95, %c0_96, %c0_97] : memref<8x8x16xf32, #tpu.memory_space<vmem>>, vector<8x8x16xf32>
    %310 = vector.shape_cast %309 : vector<8x8x16xf32> to vector<64x16xf32>
    %311 = arith.truncf %310 : vector<64x16xf32> to vector<64x16xbf16>
    %c0_98 = arith.constant 0 : index
    %c0_99 = arith.constant 0 : index
    %c0_100 = arith.constant 0 : index
    %312 = vector.load %arg15[%c0_98, %c0_99, %c0_100] : memref<8x8x16xf32, #tpu.memory_space<vmem>>, vector<8x8x16xf32>
    %313 = vector.shape_cast %312 : vector<8x8x16xf32> to vector<64x16xf32>
    %314 = arith.truncf %313 : vector<64x16xf32> to vector<64x16xbf16>
    %315 = arith.truncf %307 : vector<8x128xf32> to vector<8x128xbf16>
    %c0_101 = arith.constant 0 : index
    %c0_102 = arith.constant 0 : index
    %316 = vector.load %arg8[%c0_101, %c0_102] : memref<128x64xbf16, #tpu.memory_space<vmem>>, vector<128x64xbf16>
    %cst_103 = arith.constant dense<0.000000e+00> : vector<8x64xf32>
    %317 = tpu.matmul %315, %316, %cst_103 {dimension_numbers = #tpu.dot_dimension_numbers<[1], [0], [0], [1], [0, 0, 1, 1], [], []>} : vector<8x128xbf16>, vector<128x64xbf16>, vector<8x64xf32> -> vector<8x64xf32>
    %c0_104 = arith.constant 0 : index
    %c0_105 = arith.constant 0 : index
    %318 = vector.load %arg7[%c0_104, %c0_105] : memref<32x64xbf16, #tpu.memory_space<vmem>>, vector<16x64xbf16>
    %cst_106 = arith.constant dense<0.000000e+00> : vector<64x64xf32>
    %319 = tpu.matmul %311, %318, %cst_106 {dimension_numbers = #tpu.dot_dimension_numbers<[1], [0], [0], [1], [0, 0, 1, 1], [], []>} : vector<64x16xbf16>, vector<16x64xbf16>, vector<64x64xf32> -> vector<64x64xf32>
    %c16 = arith.constant 16 : index
    %c0_107 = arith.constant 0 : index
    %320 = vector.load %arg7[%c16, %c0_107] : memref<32x64xbf16, #tpu.memory_space<vmem>>, vector<16x64xbf16>
    %cst_108 = arith.constant dense<0.000000e+00> : vector<64x64xf32>
    %321 = tpu.matmul %314, %320, %cst_108 {dimension_numbers = #tpu.dot_dimension_numbers<[1], [0], [0], [1], [0, 0, 1, 1], [], []>} : vector<64x16xbf16>, vector<16x64xbf16>, vector<64x64xf32> -> vector<64x64xf32>
    %322 = arith.addf %319, %321 : vector<64x64xf32>
    %c0_109 = arith.constant 0 : index
    %c0_110 = arith.constant 0 : index
    %323 = vector.load %arg9[%c0_109, %c0_110] : memref<1x64xf32, #tpu.memory_space<vmem>>, vector<1x64xf32>
    %324 = vector.broadcast %323 : vector<1x64xf32> to vector<64x64xf32>
    %325 = arith.addf %322, %324 : vector<64x64xf32>
    %326 = vector.shape_cast %325 : vector<64x64xf32> to vector<8x8x64xf32>
    %327 = vector.shape_cast %317 : vector<8x64xf32> to vector<1x8x64xf32>
    %328 = vector.broadcast %327 : vector<1x8x64xf32> to vector<8x8x64xf32>
    %329 = arith.addf %326, %328 : vector<8x8x64xf32>
    %cst_111 = arith.constant 0.000000e+00 : f32
    %330 = vector.broadcast %cst_111 : f32 to vector<8x8x64xf32>
    %331 = arith.maximumf %329, %330 : vector<8x8x64xf32>
    %332 = vector.shape_cast %331 : vector<8x8x64xf32> to vector<64x64xf32>
    %333 = arith.truncf %332 : vector<64x64xf32> to vector<64x64xbf16>
    %c0_112 = arith.constant 0 : index
    %c0_113 = arith.constant 0 : index
    %334 = vector.load %arg10[%c0_112, %c0_113] : memref<64x128xbf16, #tpu.memory_space<vmem>>, vector<64x128xbf16>
    %cst_114 = arith.constant dense<0.000000e+00> : vector<64x128xf32>
    %335 = tpu.matmul %333, %334, %cst_114 {dimension_numbers = #tpu.dot_dimension_numbers<[1], [0], [0], [1], [0, 0, 1, 1], [], []>} : vector<64x64xbf16>, vector<64x128xbf16>, vector<64x128xf32> -> vector<64x128xf32>
    %c0_115 = arith.constant 0 : index
    %c0_116 = arith.constant 0 : index
    %336 = vector.load %arg11[%c0_115, %c0_116] : memref<1x128xf32, #tpu.memory_space<vmem>>, vector<1x128xf32>
    %337 = vector.broadcast %336 : vector<1x128xf32> to vector<64x128xf32>
    %338 = arith.addf %335, %337 : vector<64x128xf32>
    %c0_117 = arith.constant 0 : index
    %c0_118 = arith.constant 0 : index
    %339 = vector.load %arg13[%c0_117, %c0_118] : memref<64x128xf32, #tpu.memory_space<vmem>>, vector<64x128xf32>
    tpu.vector_store %arg13[%c0_117, %c0_118], %338 {strides = array<i32>} : memref<64x128xf32, #tpu.memory_space<vmem>>, vector<64x128xf32>,
    return
  }
}

</mosaic_0001>

<llo_original>
// kernel: joint_biaffine_forward.1
$region0: #{joint_biaffine_forward.1}
  #allocation0 [shape = 'u32[]', space=smem, size = 0x4, offset = 0x4, fixed_abs, tag = 'smem constant byte address 0x4 - core index']
  #allocation1 [shape = 'u32[72,128]{1,0:T(1,128)}', space=vmem, size = 0x9000, scoped, tag = 'internal scratch']
  #allocation2 [shape = 'f32[8,8,16]{2,1,0:T(8,128)}', space=vmem, size = 0x8000, scoped, tag = 'scratch operand']
  #allocation3 [shape = 'f32[8,8,16]{2,1,0:T(8,128)}', space=vmem, size = 0x8000, scoped, tag = 'scratch operand']
  %s0 = inlined_call_operand.vmem [shape: s32[64,1], index: 0, kind: input, shape index: {}]
  %s1 = inlined_call_operand.vmem [shape: bf16[32,32], index: 1, kind: input, shape index: {}]
  %s2 = inlined_call_operand.vmem [shape: bf16[32,128], index: 2, kind: input, shape index: {}]
  %s3 = inlined_call_operand.vmem [shape: bf16[32,128], index: 3, kind: input, shape index: {}]
  %s4 = inlined_call_operand.vmem [shape: f32[1,128], index: 4, kind: input, shape index: {}]
  %s5 = inlined_call_operand.vmem [shape: bf16[32,128], index: 5, kind: input, shape index: {}]
  %s6 = inlined_call_operand.vmem [shape: f32[1,128], index: 6, kind: input, shape index: {}]
  %s7 = inlined_call_operand.vmem [shape: bf16[32,64], index: 7, kind: input, shape index: {}]
  %s8 = inlined_call_operand.vmem [shape: bf16[128,64], index: 8, kind: input, shape index: {}]
  %s9 = inlined_call_operand.vmem [shape: f32[1,64], index: 9, kind: input, shape index: {}]
  %s10 = inlined_call_operand.vmem [shape: bf16[64,128], index: 10, kind: input, shape index: {}]
  %s11 = inlined_call_operand.vmem [shape: f32[1,128], index: 11, kind: input, shape index: {}]
  %s12 = inlined_call_operand.vmem [shape: f32[8,128], index: 12, kind: output, shape index: {0}]
  %s13 = inlined_call_operand.vmem [shape: f32[64,128], index: 13, kind: output, shape index: {1}]
  %14 = xla_tuple %s12, %s13
  %s15 = sld [smem:[#allocation0]]
  $region66: #{joint_biaffine_forward.1} parent=0
    _
  %s17 = ssub.s32 1, %s15
  %s18 = scalar_select 0, %s17, %s15
  // Predicated region
  $region2: #{joint_biaffine_forward.1} parent=0 // pred_check
    _
  $region3: #{joint_biaffine_forward.1} parent=0 // pred_check_branch
    %20 = sbr.rel (0) target = $region5
  $region4: #{joint_biaffine_forward.1} parent=0 // pred_region
    _
  $region5: #{joint_biaffine_forward.1} parent=0 // pred_fallthru
    _
  // Predicated region
  $region6: #{joint_biaffine_forward.1} parent=0 // pred_check
    _
  $region7: #{joint_biaffine_forward.1} parent=0 // pred_check_branch
    %22 = sbr.rel (0) target = $region9
  $region8: #{joint_biaffine_forward.1} parent=0 // pred_region
    _
  $region9: #{joint_biaffine_forward.1} parent=0 // pred_fallthru
    _
  // Predicated region
  $region10: #{joint_biaffine_forward.1} parent=0 // pred_check
    _
  $region11: #{joint_biaffine_forward.1} parent=0 // pred_check_branch
    %24 = sbr.rel (0) target = $region13
  $region12: #{joint_biaffine_forward.1} parent=0 // pred_region
    _
  $region13: #{joint_biaffine_forward.1} parent=0 // pred_fallthru
    _
  // Predicated region
  $region14: #{joint_biaffine_forward.1} parent=0 // pred_check
    _
  $region15: #{joint_biaffine_forward.1} parent=0 // pred_check_branch
    %26 = sbr.rel (0) target = $region17
  $region16: #{joint_biaffine_forward.1} parent=0 // pred_region
    _
  $region17: #{joint_biaffine_forward.1} parent=0 // pred_fallthru
    _
  // Predicated region
  $region18: #{joint_biaffine_forward.1} parent=0 // pred_check
    _
  $region19: #{joint_biaffine_forward.1} parent=0 // pred_check_branch
    %28 = sbr.rel (0) target = $region21
  $region20: #{joint_biaffine_forward.1} parent=0 // pred_region
    _
  $region21: #{joint_biaffine_forward.1} parent=0 // pred_fallthru
    _
  // Predicated region
  $region22: #{joint_biaffine_forward.1} parent=0 // pred_check
    _
  $region23: #{joint_biaffine_forward.1} parent=0 // pred_check_branch
    %30 = sbr.rel (0) target = $region25
  $region24: #{joint_biaffine_forward.1} parent=0 // pred_region
    _
  $region25: #{joint_biaffine_forward.1} parent=0 // pred_fallthru
    _
  // Predicated region
  $region26: #{joint_biaffine_forward.1} parent=0 // pred_check
    _
  $region27: #{joint_biaffine_forward.1} parent=0 // pred_check_branch
    %32 = sbr.rel (0) target = $region29
  $region28: #{joint_biaffine_forward.1} parent=0 // pred_region
    _
  $region29: #{joint_biaffine_forward.1} parent=0 // pred_fallthru
    _
  // Predicated region
  $region30: #{joint_biaffine_forward.1} parent=0 // pred_check
    _
  $region31: #{joint_biaffine_forward.1} parent=0 // pred_check_branch
    %34 = sbr.rel (0) target = $region33
  $region32: #{joint_biaffine_forward.1} parent=0 // pred_region
    _
  $region33: #{joint_biaffine_forward.1} parent=0 // pred_fallthru
    _
  // Predicated region
  $region34: #{joint_biaffine_forward.1} parent=0 // pred_check
    _
  $region35: #{joint_biaffine_forward.1} parent=0 // pred_check_branch
    %36 = sbr.rel (0) target = $region37
  $region36: #{joint_biaffine_forward.1} parent=0 // pred_region
    _
  $region37: #{joint_biaffine_forward.1} parent=0 // pred_fallthru
    _
  // Predicated region
  $region38: #{joint_biaffine_forward.1} parent=0 // pred_check
    _
  $region39: #{joint_biaffine_forward.1} parent=0 // pred_check_branch
    %38 = sbr.rel (0) target = $region41
  $region40: #{joint_biaffine_forward.1} parent=0 // pred_region
    _
  $region41: #{joint_biaffine_forward.1} parent=0 // pred_fallthru
    _
  // Predicated region
  $region42: #{joint_biaffine_forward.1} parent=0 // pred_check
    _
  $region43: #{joint_biaffine_forward.1} parent=0 // pred_check_branch
    %40 = sbr.rel (0) target = $region45
  $region44: #{joint_biaffine_forward.1} parent=0 // pred_region
    _
  $region45: #{joint_biaffine_forward.1} parent=0 // pred_fallthru
    _
  // Predicated region
  $region46: #{joint_biaffine_forward.1} parent=0 // pred_check
    _
  $region47: #{joint_biaffine_forward.1} parent=0 // pred_check_branch
    %42 = sbr.rel (0) target = $region49
  $region48: #{joint_biaffine_forward.1} parent=0 // pred_region
    _
  $region49: #{joint_biaffine_forward.1} parent=0 // pred_fallthru
    _
  %v44 = vld [vmem:[%s0] sm:$0xff]
  %v45 = vld [vmem:[%s0 + $0x8] sm:$0xff]
  %v46 = vld [vmem:[%s0 + $0x10] sm:$0xff]
  %v47 = vld [vmem:[%s0 + $0x18] sm:$0xff]
  %v48 = vld [vmem:[%s0 + $0x20] sm:$0xff]
  %v49 = vld [vmem:[%s0 + $0x28] sm:$0xff]
  %v50 = vld [vmem:[%s0 + $0x30] sm:$0xff]
  %v51 = vld [vmem:[%s0 + $0x38] sm:$0xff]
  %v52 = vlaneseq
  %v53 = vand.u32 %v52, 127
  %54 = vset.pattern.permute.xlu0 0
  %55 = vperm.xlu0 %54, %v44
  %v56 = vpop.permute.xlu0 %55
  %57 = vset.pattern.permute.xlu0 0
  %58 = vperm.xlu0 %57, %v45
  %v59 = vpop.permute.xlu0 %58
  %60 = vset.pattern.permute.xlu0 0
  %61 = vperm.xlu0 %60, %v46
  %v62 = vpop.permute.xlu0 %61
  %63 = vset.pattern.permute.xlu0 0
  %64 = vperm.xlu0 %63, %v47
  %v65 = vpop.permute.xlu0 %64
  %66 = vset.pattern.permute.xlu0 0
  %67 = vperm.xlu0 %66, %v48
  %v68 = vpop.permute.xlu0 %67
  %69 = vset.pattern.permute.xlu0 0
  %70 = vperm.xlu0 %69, %v49
  %v71 = vpop.permute.xlu0 %70
  %72 = vset.pattern.permute.xlu0 0
  %73 = vperm.xlu0 %72, %v50
  %v74 = vpop.permute.xlu0 %73
  %75 = vset.pattern.permute.xlu0 0
  %76 = vperm.xlu0 %75, %v51
  %v77 = vpop.permute.xlu0 %76
  %vm78 = vcmp.eq.s32.totalorder %v56, %v53
  %vm79 = vcmp.eq.s32.totalorder %v59, %v53
  %vm80 = vcmp.eq.s32.totalorder %v62, %v53
  %vm81 = vcmp.eq.s32.totalorder %v65, %v53
  %vm82 = vcmp.eq.s32.totalorder %v68, %v53
  %vm83 = vcmp.eq.s32.totalorder %v71, %v53
  %vm84 = vcmp.eq.s32.totalorder %v74, %v53
  %vm85 = vcmp.eq.s32.totalorder %v77, %v53
  %v86 = vsel %vm78, 1.0, 0.0
  %v87 = vsel %vm79, 1.0, 0.0
  %v88 = vsel %vm80, 1.0, 0.0
  %v89 = vsel %vm81, 1.0, 0.0
  %v90 = vsel %vm82, 1.0, 0.0
  %v91 = vsel %vm83, 1.0, 0.0
  %v92 = vsel %vm84, 1.0, 0.0
  %v93 = vsel %vm85, 1.0, 0.0
  %v94 = vpack.c.bf16 %v87, %v86
  %v95 = vpack.c.bf16 %v89, %v88
  %v96 = vpack.c.bf16 %v91, %v90
  %v97 = vpack.c.bf16 %v93, %v92
  %v98 = vld [vmem:[%s1] sm:$0xf]
  %v99 = vld [vmem:[%s1 + $0x4] sm:$0xf]
  %v100 = vld [vmem:[%s1 + $0x8] sm:$0xf]
  %v101 = vld [vmem:[%s1 + $0xc] sm:$0xf]
  %v106 = vunpack.c.l.b16 %v98
  %v107 = vunpack.c.l.b16 %v99
  %v108 = vunpack.c.l.b16 %v100
  %v109 = vunpack.c.l.b16 %v101
  %v110 = vpack.c.b16 %v107, %v106
  %v111 = vpack.c.b16 %v109, %v108
  %vm114 = vcmask 261120
  %v116 = vsel %vm114, %v94, 0
  %v119 = vsel %vm114, %v95, 0
  %v122 = vsel %vm114, %v96, 0
  %v125 = vsel %vm114, %v97, 0
  %127 = vmatpush.bf16.msra.mxu0 0
  %128 = vmatpush.bf16.msra.mxu0 0
  %129 = vmatpush.bf16.msra.mxu0 0
  %130 = vmatpush.bf16.msra.mxu0 0
  %131 = vmatpush.bf16.msra.mxu0 0
  %132 = vmatpush.bf16.msra.mxu0 0
  %133 = vmatpush.bf16.msra.mxu0 %v111
  %134 = vmatpush.bf16.msra.mxu0 %v110
  %135 = vmatmul.bf16.gmra.mxu0 %v116
  %v136 = vpop.f32.mrf.mxu0
  %v137 = vadd.f32 0.0, %v136
  %v138 = vpop.f32.mrf.mxu0
  %v139 = vadd.f32 0.0, %v138
  %140 = vmatmul.bf16.gmra.mxu0 %v119
  %v141 = vpop.f32.mrf.mxu0
  %v142 = vadd.f32 0.0, %v141
  %v143 = vpop.f32.mrf.mxu0
  %v144 = vadd.f32 0.0, %v143
  %145 = vmatmul.bf16.gmra.mxu0 %v122
  %v146 = vpop.f32.mrf.mxu0
  %v147 = vadd.f32 0.0, %v146
  %v148 = vpop.f32.mrf.mxu0
  %v149 = vadd.f32 0.0, %v148
  %150 = vmatmul.bf16.gmra.mxu0 %v125
  %v151 = vpop.f32.mrf.mxu0
  %v152 = vadd.f32 0.0, %v151
  %v153 = vpop.f32.mrf.mxu0
  %v154 = vadd.f32 0.0, %v153
  %155 = vdwg.mxu0
  %v156 = vpack.c.bf16 %v139, %v137
  %v157 = vpack.c.bf16 %v144, %v142
  %v158 = vpack.c.bf16 %v149, %v147
  %v159 = vpack.c.bf16 %v154, %v152
  %v160 = vld [vmem:[%s2] sm:$0xf]
  %v161 = vld [vmem:[%s2 + $0x4] sm:$0xf]
  %v162 = vld [vmem:[%s2 + $0x8] sm:$0xf]
  %v163 = vld [vmem:[%s2 + $0xc] sm:$0xf]
  %v164 = vld [vmem:[%s4] sm:$0x1]
  %v166 = vperm.slane %v164, 0
  %v172 = vunpack.c.l.b16 %v160
  %v173 = vunpack.c.l.b16 %v161
  %v174 = vunpack.c.l.b16 %v162
  %v175 = vunpack.c.l.b16 %v163
  %v176 = vpack.c.b16 %v173, %v172
  %v177 = vpack.c.b16 %v175, %v174
  %v181 = vsel %vm114, %v156, 0
  %v184 = vsel %vm114, %v157, 0
  %v187 = vsel %vm114, %v158, 0
  %v190 = vsel %vm114, %v159, 0
  %192 = vmatpush.bf16.msra.mxu0 0
  %193 = vmatpush.bf16.msra.mxu0 0
  %194 = vmatpush.bf16.msra.mxu0 0
  %195 = vmatpush.bf16.msra.mxu0 0
  %196 = vmatpush.bf16.msra.mxu0 0
  %197 = vmatpush.bf16.msra.mxu0 0
  %198 = vmatpush.bf16.msra.mxu0 %v177
  %199 = vmatpush.bf16.msra.mxu0 %v176
  %200 = vmatmul.bf16.gmra.mxu0 %v181
  %v201 = vpop.f32.mrf.mxu0
  %v202 = vadd.f32 %v166, %v201
  %v203 = vpop.f32.mrf.mxu0
  %v204 = vadd.f32 %v166, %v203
  %205 = vmatmul.bf16.gmra.mxu0 %v184
  %v206 = vpop.f32.mrf.mxu0
  %v207 = vadd.f32 %v166, %v206
  %v208 = vpop.f32.mrf.mxu0
  %v209 = vadd.f32 %v166, %v208
  %210 = vmatmul.bf16.gmra.mxu0 %v187
  %v211 = vpop.f32.mrf.mxu0
  %v212 = vadd.f32 %v166, %v211
  %v213 = vpop.f32.mrf.mxu0
  %v214 = vadd.f32 %v166, %v213
  %215 = vmatmul.bf16.gmra.mxu0 %v190
  %v216 = vpop.f32.mrf.mxu0
  %v217 = vadd.f32 %v166, %v216
  %v218 = vpop.f32.mrf.mxu0
  %v219 = vadd.f32 %v166, %v218
  %220 = vdwg.mxu0
  %vm221 = vcmp.lt.s32.totalorder %v53, 0
  %v222 = vsub.s32 0, %v53
  %v223 = vsel %vm221, %v222, %v53
  %v224 = vshrl.u32 %v223, 5
  %v225 = vand.u32 %v223, 31
  %v226 = vsub.s32 0, %v225
  %v227 = vsel %vm221, %v226, %v225
  %vm228 = vcmp.ne.s32.totalorder %v227, 0
  %vm229 = vcmp.lt.s32.totalorder %v227, 0
  %vm230 = vmand %vm229, %vm228
  %v231 = vadd.s32 %v227, 32
  %v232 = vsel %vm230, %v231, %v227
  %vm233 = vcmp.lt.s32.totalorder %v232, 16
  %v234 = vsel %vm233, %v202, %v219
  %v235 = vld [vmem:[%s3] sm:$0xf]
  %v236 = vld [vmem:[%s3 + $0x4] sm:$0xf]
  %v237 = vld [vmem:[%s3 + $0x8] sm:$0xf]
  %v238 = vld [vmem:[%s3 + $0xc] sm:$0xf]
  %v243 = vunpack.c.l.b16 %v235
  %v244 = vunpack.c.l.b16 %v236
  %v245 = vunpack.c.l.b16 %v237
  %v246 = vunpack.c.l.b16 %v238
  %v247 = vpack.c.b16 %v244, %v243
  %v248 = vpack.c.b16 %v246, %v245
  %v252 = vsel %vm114, 0, 0
  %254 = vmatpush.bf16.msra.mxu0 0
  %255 = vmatpush.bf16.msra.mxu0 0
  %256 = vmatpush.bf16.msra.mxu0 0
  %257 = vmatpush.bf16.msra.mxu0 0
  %258 = vmatpush.bf16.msra.mxu0 0
  %259 = vmatpush.bf16.msra.mxu0 0
  %260 = vmatpush.bf16.msra.mxu0 %v248
  %261 = vmatpush.bf16.msra.mxu0 %v247
  %262 = vmatmul.bf16.gmra.mxu0 %v252
  %v263 = vpop.f32.mrf.mxu0
  %v264 = vadd.f32 0.0, %v263
  %v265 = vpop.f32.mrf.mxu0
  %266 = vdwg.mxu0
  %v267 = vadd.f32 %v234, %v264
  %v268 = vxor.u32 %v267, 2147483648
  %v269 = vmul.f32 %v268, 1.442695
  %v270 = vpow.pop %v269
  %v271 = vadd.f32 %v270, 1.0
  %v272 = vrcp.pop %v271
  %v273 = vmul.f32 %v271, %v272
  %v274 = vsub.f32 1.0, %v273
  %v275 = vmul.f32 %v272, %v274
  %v276 = vadd.f32 %v272, %v275
  %vm277 = vweird.f32 %v271
  %vm278 = vweird.f32 %v272
  %vm279 = vmor %vm277, %vm278
  %v280 = vsel %vm279, %v272, %v276
  %v281 = vand.u32 2147483647, %v271
  %vm282 = vcmp.eq.f32.partialorder %v281, 8.507059e+37
  %v283 = vand.u32 %v271, 2147483648
  %v284 = vor.u32 1.1754944e-38, %v283
  %v285 = vsel %vm282, %v284, %v280
  %v286 = vmul.f32 1.0, %v285
  %v287 = vtanh.pop %v267
  %v288 = vmul.f32 %v286, 0.0
  %290 = vrot.lane.b32.xlu0 %v287, 32
  %v291 = vpop.permute.xlu0 %290
  %v293 = vmul.f32 %v286, %v291
  %295 = vrot.lane.b32.xlu0 %v293, 32
  %v296 = vpop.permute.xlu0 %295
  %v298 = vadd.f32 %v288, %v296
  %v299 = vtanh.pop %v298
  %301 = vrot.lane.b32.xlu0 %v299, 32
  %v302 = vpop.permute.xlu0 %301
  %v304 = vmul.f32 %v286, %v302
  %306 = vrot.lane.b32.xlu0 %v304, 64
  %v307 = vpop.permute.xlu0 %306
  %vm309 = vcmask 130048
  %310 = vst.msk [vmem:[#allocation2] sm:$0xff] %vm309, %v307
  %311 = vrot.lane.b32.xlu0 %v304, 48
  %v312 = vpop.permute.xlu0 %311
  %s314 = scalar_lea.vmem [#allocation3], 56
  %315 = vst.msk [vmem:[%s314] sm:$0xff] %vm309, %v312
  %v316 = vsel %vm233, %v204, %v217
  %v317 = vpack.c.bf16 %v304, %v304
  %v318 = vld [vmem:[%s3] sm:$0xf]
  %v319 = vld [vmem:[%s3 + $0x4] sm:$0xf]
  %v320 = vld [vmem:[%s3 + $0x8] sm:$0xf]
  %v321 = vld [vmem:[%s3 + $0xc] sm:$0xf]
  %323 = vrot.lane.b32.xlu0 %v317, 64
  %v324 = vpop.permute.xlu0 %323
  %v329 = vunpack.c.l.b16 %v318
  %v330 = vunpack.c.l.b16 %v319
  %v331 = vunpack.c.l.b16 %v320
  %v332 = vunpack.c.l.b16 %v321
  %v333 = vpack.c.b16 %v330, %v329
  %v334 = vpack.c.b16 %v332, %v331
  %v338 = vsel %vm114, %v324, 0
  %340 = vmatpush.bf16.msra.mxu0 0
  %341 = vmatpush.bf16.msra.mxu0 0
  %342 = vmatpush.bf16.msra.mxu0 0
  %343 = vmatpush.bf16.msra.mxu0 0
  %344 = vmatpush.bf16.msra.mxu0 0
  %345 = vmatpush.bf16.msra.mxu0 0
  %346 = vmatpush.bf16.msra.mxu0 %v334
  %347 = vmatpush.bf16.msra.mxu0 %v333
  %348 = vmatmul.bf16.gmra.mxu0 %v338
  %v349 = vpop.f32.mrf.mxu0
  %v350 = vadd.f32 0.0, %v349
  %v351 = vpop.f32.mrf.mxu0
  %352 = vdwg.mxu0
  %v353 = vadd.f32 %v316, %v350
  %v354 = vxor.u32 %v353, 2147483648
  %v355 = vmul.f32 %v354, 1.442695
  %v356 = vpow.pop %v355
  %v357 = vadd.f32 %v356, 1.0
  %v358 = vrcp.pop %v357
  %v359 = vmul.f32 %v357, %v358
  %v360 = vsub.f32 1.0, %v359
  %v361 = vmul.f32 %v358, %v360
  %v362 = vadd.f32 %v358, %v361
  %vm363 = vweird.f32 %v357
  %vm364 = vweird.f32 %v358
  %vm365 = vmor %vm363, %vm364
  %v366 = vsel %vm365, %v358, %v362
  %v367 = vand.u32 2147483647, %v357
  %vm368 = vcmp.eq.f32.partialorder %v367, 8.507059e+37
  %v369 = vand.u32 %v357, 2147483648
  %v370 = vor.u32 1.1754944e-38, %v369
  %v371 = vsel %vm368, %v370, %v366
  %v372 = vmul.f32 1.0, %v371
  %v373 = vtanh.pop %v353
  %v374 = vmul.f32 %v372, %v298
  %376 = vrot.lane.b32.xlu0 %v373, 32
  %v377 = vpop.permute.xlu0 %376
  %v379 = vmul.f32 %v372, %v377
  %381 = vrot.lane.b32.xlu0 %v379, 32
  %v382 = vpop.permute.xlu0 %381
  %v384 = vadd.f32 %v374, %v382
  %v385 = vtanh.pop %v384
  %387 = vrot.lane.b32.xlu0 %v385, 32
  %v388 = vpop.permute.xlu0 %387
  %v390 = vmul.f32 %v372, %v388
  %392 = vrot.lane.b32.xlu0 %v390, 64
  %v393 = vpop.permute.xlu0 %392
  %s395 = scalar_lea.vmem [#allocation2], 8
  %396 = vst.msk [vmem:[%s395] sm:$0xff] %vm309, %v393
  %397 = vrot.lane.b32.xlu0 %v390, 48
  %v398 = vpop.permute.xlu0 %397
  %s400 = scalar_lea.vmem [#allocation3], 48
  %401 = vst.msk [vmem:[%s400] sm:$0xff] %vm309, %v398
  %v402 = vsel %vm233, %v207, %v214
  %v403 = vpack.c.bf16 %v390, %v390
  %v404 = vld [vmem:[%s3] sm:$0xf]
  %v405 = vld [vmem:[%s3 + $0x4] sm:$0xf]
  %v406 = vld [vmem:[%s3 + $0x8] sm:$0xf]
  %v407 = vld [vmem:[%s3 + $0xc] sm:$0xf]
  %409 = vrot.lane.b32.xlu0 %v403, 64
  %v410 = vpop.permute.xlu0 %409
  %v415 = vunpack.c.l.b16 %v404
  %v416 = vunpack.c.l.b16 %v405
  %v417 = vunpack.c.l.b16 %v406
  %v418 = vunpack.c.l.b16 %v407
  %v419 = vpack.c.b16 %v416, %v415
  %v420 = vpack.c.b16 %v418, %v417
  %v424 = vsel %vm114, %v410, 0
  %426 = vmatpush.bf16.msra.mxu0 0
  %427 = vmatpush.bf16.msra.mxu0 0
  %428 = vmatpush.bf16.msra.mxu0 0
  %429 = vmatpush.bf16.msra.mxu0 0
  %430 = vmatpush.bf16.msra.mxu0 0
  %431 = vmatpush.bf16.msra.mxu0 0
  %432 = vmatpush.bf16.msra.mxu0 %v420
  %433 = vmatpush.bf16.msra.mxu0 %v419
  %434 = vmatmul.bf16.gmra.mxu0 %v424
  %v435 = vpop.f32.mrf.mxu0
  %v436 = vadd.f32 0.0, %v435
  %v437 = vpop.f32.mrf.mxu0
  %438 = vdwg.mxu0
  %v439 = vadd.f32 %v402, %v436
  %v440 = vxor.u32 %v439, 2147483648
  %v441 = vmul.f32 %v440, 1.442695
  %v442 = vpow.pop %v441
  %v443 = vadd.f32 %v442, 1.0
  %v444 = vrcp.pop %v443
  %v445 = vmul.f32 %v443, %v444
  %v446 = vsub.f32 1.0, %v445
  %v447 = vmul.f32 %v444, %v446
  %v448 = vadd.f32 %v444, %v447
  %vm449 = vweird.f32 %v443
  %vm450 = vweird.f32 %v444
  %vm451 = vmor %vm449, %vm450
  %v452 = vsel %vm451, %v444, %v448
  %v453 = vand.u32 2147483647, %v443
  %vm454 = vcmp.eq.f32.partialorder %v453, 8.507059e+37
  %v455 = vand.u32 %v443, 2147483648
  %v456 = vor.u32 1.1754944e-38, %v455
  %v457 = vsel %vm454, %v456, %v452
  %v458 = vmul.f32 1.0, %v457
  %v459 = vtanh.pop %v439
  %v460 = vmul.f32 %v458, %v384
  %462 = vrot.lane.b32.xlu0 %v459, 32
  %v463 = vpop.permute.xlu0 %462
  %v465 = vmul.f32 %v458, %v463
  %467 = vrot.lane.b32.xlu0 %v465, 32
  %v468 = vpop.permute.xlu0 %467
  %v470 = vadd.f32 %v460, %v468
  %v471 = vtanh.pop %v470
  %473 = vrot.lane.b32.xlu0 %v471, 32
  %v474 = vpop.permute.xlu0 %473
  %v476 = vmul.f32 %v458, %v474
  %478 = vrot.lane.b32.xlu0 %v476, 64
  %v479 = vpop.permute.xlu0 %478
  %s481 = scalar_lea.vmem [#allocation2], 16
  %482 = vst.msk [vmem:[%s481] sm:$0xff] %vm309, %v479
  %483 = vrot.lane.b32.xlu0 %v476, 48
  %v484 = vpop.permute.xlu0 %483
  %s486 = scalar_lea.vmem [#allocation3], 40
  %487 = vst.msk [vmem:[%s486] sm:$0xff] %vm309, %v484
  %v488 = vsel %vm233, %v209, %v212
  %v489 = vpack.c.bf16 %v476, %v476
  %v490 = vld [vmem:[%s3] sm:$0xf]
  %v491 = vld [vmem:[%s3 + $0x4] sm:$0xf]
  %v492 = vld [vmem:[%s3 + $0x8] sm:$0xf]
  %v493 = vld [vmem:[%s3 + $0xc] sm:$0xf]
  %495 = vrot.lane.b32.xlu0 %v489, 64
  %v496 = vpop.permute.xlu0 %495
  %v501 = vunpack.c.l.b16 %v490
  %v502 = vunpack.c.l.b16 %v491
  %v503 = vunpack.c.l.b16 %v492
  %v504 = vunpack.c.l.b16 %v493
  %v505 = vpack.c.b16 %v502, %v501
  %v506 = vpack.c.b16 %v504, %v503
  %v510 = vsel %vm114, %v496, 0
  %512 = vmatpush.bf16.msra.mxu0 0
  %513 = vmatpush.bf16.msra.mxu0 0
  %514 = vmatpush.bf16.msra.mxu0 0
  %515 = vmatpush.bf16.msra.mxu0 0
  %516 = vmatpush.bf16.msra.mxu0 0
  %517 = vmatpush.bf16.msra.mxu0 0
  %518 = vmatpush.bf16.msra.mxu0 %v506
  %519 = vmatpush.bf16.msra.mxu0 %v505
  %520 = vmatmul.bf16.gmra.mxu0 %v510
  %v521 = vpop.f32.mrf.mxu0
  %v522 = vadd.f32 0.0, %v521
  %v523 = vpop.f32.mrf.mxu0
  %524 = vdwg.mxu0
  %v525 = vadd.f32 %v488, %v522
  %v526 = vxor.u32 %v525, 2147483648
  %v527 = vmul.f32 %v526, 1.442695
  %v528 = vpow.pop %v527
  %v529 = vadd.f32 %v528, 1.0
  %v530 = vrcp.pop %v529
  %v531 = vmul.f32 %v529, %v530
  %v532 = vsub.f32 1.0, %v531
  %v533 = vmul.f32 %v530, %v532
  %v534 = vadd.f32 %v530, %v533
  %vm535 = vweird.f32 %v529
  %vm536 = vweird.f32 %v530
  %vm537 = vmor %vm535, %vm536
  %v538 = vsel %vm537, %v530, %v534
  %v539 = vand.u32 2147483647, %v529
  %vm540 = vcmp.eq.f32.partialorder %v539, 8.507059e+37
  %v541 = vand.u32 %v529, 2147483648
  %v542 = vor.u32 1.1754944e-38, %v541
  %v543 = vsel %vm540, %v542, %v538
  %v544 = vmul.f32 1.0, %v543
  %v545 = vtanh.pop %v525
  %v546 = vmul.f32 %v544, %v470
  %548 = vrot.lane.b32.xlu0 %v545, 32
  %v549 = vpop.permute.xlu0 %548
  %v551 = vmul.f32 %v544, %v549
  %553 = vrot.lane.b32.xlu0 %v551, 32
  %v554 = vpop.permute.xlu0 %553
  %v556 = vadd.f32 %v546, %v554
  %v557 = vtanh.pop %v556
  %559 = vrot.lane.b32.xlu0 %v557, 32
  %v560 = vpop.permute.xlu0 %559
  %v562 = vmul.f32 %v544, %v560
  %564 = vrot.lane.b32.xlu0 %v562, 64
  %v565 = vpop.permute.xlu0 %564
  %s567 = scalar_lea.vmem [#allocation2], 24
  %568 = vst.msk [vmem:[%s567] sm:$0xff] %vm309, %v565
  %569 = vrot.lane.b32.xlu0 %v562, 48
  %v570 = vpop.permute.xlu0 %569
  %s572 = scalar_lea.vmem [#allocation3], 32
  %573 = vst.msk [vmem:[%s572] sm:$0xff] %vm309, %v570
  %v574 = vsel %vm233, %v212, %v209
  %v575 = vpack.c.bf16 %v562, %v562
  %v576 = vld [vmem:[%s3] sm:$0xf]
  %v577 = vld [vmem:[%s3 + $0x4] sm:$0xf]
  %v578 = vld [vmem:[%s3 + $0x8] sm:$0xf]
  %v579 = vld [vmem:[%s3 + $0xc] sm:$0xf]
  %581 = vrot.lane.b32.xlu0 %v575, 64
  %v582 = vpop.permute.xlu0 %581
  %v587 = vunpack.c.l.b16 %v576
  %v588 = vunpack.c.l.b16 %v577
  %v589 = vunpack.c.l.b16 %v578
  %v590 = vunpack.c.l.b16 %v579
  %v591 = vpack.c.b16 %v588, %v587
  %v592 = vpack.c.b16 %v590, %v589
  %v596 = vsel %vm114, %v582, 0
  %598 = vmatpush.bf16.msra.mxu0 0
  %599 = vmatpush.bf16.msra.mxu0 0
  %600 = vmatpush.bf16.msra.mxu0 0
  %601 = vmatpush.bf16.msra.mxu0 0
  %602 = vmatpush.bf16.msra.mxu0 0
  %603 = vmatpush.bf16.msra.mxu0 0
  %604 = vmatpush.bf16.msra.mxu0 %v592
  %605 = vmatpush.bf16.msra.mxu0 %v591
  %606 = vmatmul.bf16.gmra.mxu0 %v596
  %v607 = vpop.f32.mrf.mxu0
  %v608 = vadd.f32 0.0, %v607
  %v609 = vpop.f32.mrf.mxu0
  %610 = vdwg.mxu0
  %v611 = vadd.f32 %v574, %v608
  %v612 = vxor.u32 %v611, 2147483648
  %v613 = vmul.f32 %v612, 1.442695
  %v614 = vpow.pop %v613
  %v615 = vadd.f32 %v614, 1.0
  %v616 = vrcp.pop %v615
  %v617 = vmul.f32 %v615, %v616
  %v618 = vsub.f32 1.0, %v617
  %v619 = vmul.f32 %v616, %v618
  %v620 = vadd.f32 %v616, %v619
  %vm621 = vweird.f32 %v615
  %vm622 = vweird.f32 %v616
  %vm623 = vmor %vm621, %vm622
  %v624 = vsel %vm623, %v616, %v620
  %v625 = vand.u32 2147483647, %v615
  %vm626 = vcmp.eq.f32.partialorder %v625, 8.507059e+37
  %v627 = vand.u32 %v615, 2147483648
  %v628 = vor.u32 1.1754944e-38, %v627
  %v629 = vsel %vm626, %v628, %v624
  %v630 = vmul.f32 1.0, %v629
  %v631 = vtanh.pop %v611
  %v632 = vmul.f32 %v630, %v556
  %634 = vrot.lane.b32.xlu0 %v631, 32
  %v635 = vpop.permute.xlu0 %634
  %v637 = vmul.f32 %v630, %v635
  %639 = vrot.lane.b32.xlu0 %v637, 32
  %v640 = vpop.permute.xlu0 %639
  %v642 = vadd.f32 %v632, %v640
  %v643 = vtanh.pop %v642
  %645 = vrot.lane.b32.xlu0 %v643, 32
  %v646 = vpop.permute.xlu0 %645
  %v648 = vmul.f32 %v630, %v646
  %650 = vrot.lane.b32.xlu0 %v648, 64
  %v651 = vpop.permute.xlu0 %650
  %s653 = scalar_lea.vmem [#allocation2], 32
  %654 = vst.msk [vmem:[%s653] sm:$0xff] %vm309, %v651
  %655 = vrot.lane.b32.xlu0 %v648, 48
  %v656 = vpop.permute.xlu0 %655
  %s658 = scalar_lea.vmem [#allocation3], 24
  %659 = vst.msk [vmem:[%s658] sm:$0xff] %vm309, %v656
  %v660 = vsel %vm233, %v214, %v207
  %v661 = vpack.c.bf16 %v648, %v648
  %v662 = vld [vmem:[%s3] sm:$0xf]
  %v663 = vld [vmem:[%s3 + $0x4] sm:$0xf]
  %v664 = vld [vmem:[%s3 + $0x8] sm:$0xf]
  %v665 = vld [vmem:[%s3 + $0xc] sm:$0xf]
  %667 = vrot.lane.b32.xlu0 %v661, 64
  %v668 = vpop.permute.xlu0 %667
  %v673 = vunpack.c.l.b16 %v662
  %v674 = vunpack.c.l.b16 %v663
  %v675 = vunpack.c.l.b16 %v664
  %v676 = vunpack.c.l.b16 %v665
  %v677 = vpack.c.b16 %v674, %v673
  %v678 = vpack.c.b16 %v676, %v675
  %v682 = vsel %vm114, %v668, 0
  %684 = vmatpush.bf16.msra.mxu0 0
  %685 = vmatpush.bf16.msra.mxu0 0
  %686 = vmatpush.bf16.msra.mxu0 0
  %687 = vmatpush.bf16.msra.mxu0 0
  %688 = vmatpush.bf16.msra.mxu0 0
  %689 = vmatpush.bf16.msra.mxu0 0
  %690 = vmatpush.bf16.msra.mxu0 %v678
  %691 = vmatpush.bf16.msra.mxu0 %v677
  %692 = vmatmul.bf16.gmra.mxu0 %v682
  %v693 = vpop.f32.mrf.mxu0
  %v694 = vadd.f32 0.0, %v693
  %v695 = vpop.f32.mrf.mxu0
  %696 = vdwg.mxu0
  %v697 = vadd.f32 %v660, %v694
  %v698 = vxor.u32 %v697, 2147483648
  %v699 = vmul.f32 %v698, 1.442695
  %v700 = vpow.pop %v699
  %v701 = vadd.f32 %v700, 1.0
  %v702 = vrcp.pop %v701
  %v703 = vmul.f32 %v701, %v702
  %v704 = vsub.f32 1.0, %v703
  %v705 = vmul.f32 %v702, %v704
  %v706 = vadd.f32 %v702, %v705
  %vm707 = vweird.f32 %v701
  %vm708 = vweird.f32 %v702
  %vm709 = vmor %vm707, %vm708
  %v710 = vsel %vm709, %v702, %v706
  %v711 = vand.u32 2147483647, %v701
  %vm712 = vcmp.eq.f32.partialorder %v711, 8.507059e+37
  %v713 = vand.u32 %v701, 2147483648
  %v714 = vor.u32 1.1754944e-38, %v713
  %v715 = vsel %vm712, %v714, %v710
  %v716 = vmul.f32 1.0, %v715
  %v717 = vtanh.pop %v697
  %v718 = vmul.f32 %v716, %v642
  %720 = vrot.lane.b32.xlu0 %v717, 32
  %v721 = vpop.permute.xlu0 %720
  %v723 = vmul.f32 %v716, %v721
  %725 = vrot.lane.b32.xlu0 %v723, 32
  %v726 = vpop.permute.xlu0 %725
  %v728 = vadd.f32 %v718, %v726
  %v729 = vtanh.pop %v728
  %731 = vrot.lane.b32.xlu0 %v729, 32
  %v732 = vpop.permute.xlu0 %731
  %v734 = vmul.f32 %v716, %v732
  %736 = vrot.lane.b32.xlu0 %v734, 64
  %v737 = vpop.permute.xlu0 %736
  %s739 = scalar_lea.vmem [#allocation2], 40
  %740 = vst.msk [vmem:[%s739] sm:$0xff] %vm309, %v737
  %741 = vrot.lane.b32.xlu0 %v734, 48
  %v742 = vpop.permute.xlu0 %741
  %s744 = scalar_lea.vmem [#allocation3], 16
  %745 = vst.msk [vmem:[%s744] sm:$0xff] %vm309, %v742
  %v746 = vsel %vm233, %v217, %v204
  %v747 = vpack.c.bf16 %v734, %v734
  %v748 = vld [vmem:[%s3] sm:$0xf]
  %v749 = vld [vmem:[%s3 + $0x4] sm:$0xf]
  %v750 = vld [vmem:[%s3 + $0x8] sm:$0xf]
  %v751 = vld [vmem:[%s3 + $0xc] sm:$0xf]
  %753 = vrot.lane.b32.xlu0 %v747, 64
  %v754 = vpop.permute.xlu0 %753
  %v759 = vunpack.c.l.b16 %v748
  %v760 = vunpack.c.l.b16 %v749
  %v761 = vunpack.c.l.b16 %v750
  %v762 = vunpack.c.l.b16 %v751
  %v763 = vpack.c.b16 %v760, %v759
  %v764 = vpack.c.b16 %v762, %v761
  %v768 = vsel %vm114, %v754, 0
  %770 = vmatpush.bf16.msra.mxu0 0
  %771 = vmatpush.bf16.msra.mxu0 0
  %772 = vmatpush.bf16.msra.mxu0 0
  %773 = vmatpush.bf16.msra.mxu0 0
  %774 = vmatpush.bf16.msra.mxu0 0
  %775 = vmatpush.bf16.msra.mxu0 0
  %776 = vmatpush.bf16.msra.mxu0 %v764
  %777 = vmatpush.bf16.msra.mxu0 %v763
  %778 = vmatmul.bf16.gmra.mxu0 %v768
  %v779 = vpop.f32.mrf.mxu0
  %v780 = vadd.f32 0.0, %v779
  %v781 = vpop.f32.mrf.mxu0
  %782 = vdwg.mxu0
  %v783 = vadd.f32 %v746, %v780
  %v784 = vxor.u32 %v783, 2147483648
  %v785 = vmul.f32 %v784, 1.442695
  %v786 = vpow.pop %v785
  %v787 = vadd.f32 %v786, 1.0
  %v788 = vrcp.pop %v787
  %v789 = vmul.f32 %v787, %v788
  %v790 = vsub.f32 1.0, %v789
  %v791 = vmul.f32 %v788, %v790
  %v792 = vadd.f32 %v788, %v791
  %vm793 = vweird.f32 %v787
  %vm794 = vweird.f32 %v788
  %vm795 = vmor %vm793, %vm794
  %v796 = vsel %vm795, %v788, %v792
  %v797 = vand.u32 2147483647, %v787
  %vm798 = vcmp.eq.f32.partialorder %v797, 8.507059e+37
  %v799 = vand.u32 %v787, 2147483648
  %v800 = vor.u32 1.1754944e-38, %v799
  %v801 = vsel %vm798, %v800, %v796
  %v802 = vmul.f32 1.0, %v801
  %v803 = vtanh.pop %v783
  %v804 = vmul.f32 %v802, %v728
  %806 = vrot.lane.b32.xlu0 %v803, 32
  %v807 = vpop.permute.xlu0 %806
  %v809 = vmul.f32 %v802, %v807
  %811 = vrot.lane.b32.xlu0 %v809, 32
  %v812 = vpop.permute.xlu0 %811
  %v814 = vadd.f32 %v804, %v812
  %v815 = vtanh.pop %v814
  %817 = vrot.lane.b32.xlu0 %v815, 32
  %v818 = vpop.permute.xlu0 %817
  %v820 = vmul.f32 %v802, %v818
  %822 = vrot.lane.b32.xlu0 %v820, 64
  %v823 = vpop.permute.xlu0 %822
  %s825 = scalar_lea.vmem [#allocation2], 48
  %826 = vst.msk [vmem:[%s825] sm:$0xff] %vm309, %v823
  %827 = vrot.lane.b32.xlu0 %v820, 48
  %v828 = vpop.permute.xlu0 %827
  %s830 = scalar_lea.vmem [#allocation3], 8
  %831 = vst.msk [vmem:[%s830] sm:$0xff] %vm309, %v828
  %v832 = vsel %vm233, %v219, %v202
  %v833 = vpack.c.bf16 %v820, %v820
  %v834 = vld [vmem:[%s3] sm:$0xf]
  %v835 = vld [vmem:[%s3 + $0x4] sm:$0xf]
  %v836 = vld [vmem:[%s3 + $0x8] sm:$0xf]
  %v837 = vld [vmem:[%s3 + $0xc] sm:$0xf]
  %839 = vrot.lane.b32.xlu0 %v833, 64
  %v840 = vpop.permute.xlu0 %839
  %v845 = vunpack.c.l.b16 %v834
  %v846 = vunpack.c.l.b16 %v835
  %v847 = vunpack.c.l.b16 %v836
  %v848 = vunpack.c.l.b16 %v837
  %v849 = vpack.c.b16 %v846, %v845
  %v850 = vpack.c.b16 %v848, %v847
  %v854 = vsel %vm114, %v840, 0
  %856 = vmatpush.bf16.msra.mxu0 0
  %857 = vmatpush.bf16.msra.mxu0 0
  %858 = vmatpush.bf16.msra.mxu0 0
  %859 = vmatpush.bf16.msra.mxu0 0
  %860 = vmatpush.bf16.msra.mxu0 0
  %861 = vmatpush.bf16.msra.mxu0 0
  %862 = vmatpush.bf16.msra.mxu0 %v850
  %863 = vmatpush.bf16.msra.mxu0 %v849
  %864 = vmatmul.bf16.gmra.mxu0 %v854
  %v865 = vpop.f32.mrf.mxu0
  %v866 = vadd.f32 0.0, %v865
  %v867 = vpop.f32.mrf.mxu0
  %868 = vdwg.mxu0
  %v869 = vadd.f32 %v832, %v866
  %v870 = vxor.u32 %v869, 2147483648
  %v871 = vmul.f32 %v870, 1.442695
  %v872 = vpow.pop %v871
  %v873 = vadd.f32 %v872, 1.0
  %v874 = vrcp.pop %v873
  %v875 = vmul.f32 %v873, %v874
  %v876 = vsub.f32 1.0, %v875
  %v877 = vmul.f32 %v874, %v876
  %v878 = vadd.f32 %v874, %v877
  %vm879 = vweird.f32 %v873
  %vm880 = vweird.f32 %v874
  %vm881 = vmor %vm879, %vm880
  %v882 = vsel %vm881, %v874, %v878
  %v883 = vand.u32 2147483647, %v873
  %vm884 = vcmp.eq.f32.partialorder %v883, 8.507059e+37
  %v885 = vand.u32 %v873, 2147483648
  %v886 = vor.u32 1.1754944e-38, %v885
  %v887 = vsel %vm884, %v886, %v882
  %v888 = vmul.f32 1.0, %v887
  %v889 = vtanh.pop %v869
  %v890 = vmul.f32 %v888, %v814
  %892 = vrot.lane.b32.xlu0 %v889, 32
  %v893 = vpop.permute.xlu0 %892
  %v895 = vmul.f32 %v888, %v893
  %897 = vrot.lane.b32.xlu0 %v895, 32
  %v898 = vpop.permute.xlu0 %897
  %v900 = vadd.f32 %v890, %v898
  %v901 = vtanh.pop %v900
  %903 = vrot.lane.b32.xlu0 %v901, 32
  %v904 = vpop.permute.xlu0 %903
  %v906 = vmul.f32 %v888, %v904
  %908 = vrot.lane.b32.xlu0 %v906, 64
  %v909 = vpop.permute.xlu0 %908
  %s911 = scalar_lea.vmem [#allocation2], 56
  %912 = vst.msk [vmem:[%s911] sm:$0xff] %vm309, %v909
  %913 = vrot.lane.b32.xlu0 %v906, 48
  %v914 = vpop.permute.xlu0 %913
  %916 = vst.msk [vmem:[#allocation3] sm:$0xff] %vm309, %v914
  %v917 = vpack.c.bf16 %v906, %v906
  %v918 = vld [vmem:[%s5] sm:$0xf]
  %v919 = vld [vmem:[%s5 + $0x4] sm:$0xf]
  %v920 = vld [vmem:[%s5 + $0x8] sm:$0xf]
  %v921 = vld [vmem:[%s5 + $0xc] sm:$0xf]
  %v922 = vld [vmem:[%s6] sm:$0x1]
  %v924 = vperm.slane %v922, 0
  %927 = vrot.lane.b32.xlu0 %v917, 64
  %v928 = vpop.permute.xlu0 %927
  %v933 = vunpack.c.l.b16 %v918
  %v934 = vunpack.c.l.b16 %v919
  %v935 = vunpack.c.l.b16 %v920
  %v936 = vunpack.c.l.b16 %v921
  %v937 = vpack.c.b16 %v934, %v933
  %v938 = vpack.c.b16 %v936, %v935
  %v942 = vsel %vm114, %v928, 0
  %944 = vmatpush.bf16.msra.mxu0 0
  %945 = vmatpush.bf16.msra.mxu0 0
  %946 = vmatpush.bf16.msra.mxu0 0
  %947 = vmatpush.bf16.msra.mxu0 0
  %948 = vmatpush.bf16.msra.mxu0 0
  %949 = vmatpush.bf16.msra.mxu0 0
  %950 = vmatpush.bf16.msra.mxu0 %v938
  %951 = vmatpush.bf16.msra.mxu0 %v937
  %952 = vmatmul.bf16.gmra.mxu0 %v942
  %v953 = vpop.f32.mrf.mxu0
  %v954 = vadd.f32 %v924, %v953
  %v955 = vpop.f32.mrf.mxu0
  %956 = vdwg.mxu0
  %957 = vst [vmem:[%s12] sm:$0xff] %v954
  %v958 = vld [vmem:[#allocation2] sm:$0xff]
  %v959 = vld [vmem:[#allocation2 + $0x8] sm:$0xff]
  %v960 = vld [vmem:[#allocation2 + $0x10] sm:$0xff]
  %v961 = vld [vmem:[#allocation2 + $0x18] sm:$0xff]
  %v962 = vld [vmem:[#allocation2 + $0x20] sm:$0xff]
  %v963 = vld [vmem:[#allocation2 + $0x28] sm:$0xff]
  %v964 = vld [vmem:[#allocation2 + $0x30] sm:$0xff]
  %v965 = vld [vmem:[#allocation2 + $0x38] sm:$0xff]
  %v966 = vpack.c.bf16 %v959, %v958
  %v967 = vpack.c.bf16 %v961, %v960
  %v968 = vpack.c.bf16 %v963, %v962
  %v969 = vpack.c.bf16 %v965, %v964
  %v970 = vld [vmem:[#allocation3] sm:$0xff]
  %v971 = vld [vmem:[#allocation3 + $0x8] sm:$0xff]
  %v972 = vld [vmem:[#allocation3 + $0x10] sm:$0xff]
  %v973 = vld [vmem:[#allocation3 + $0x18] sm:$0xff]
  %v974 = vld [vmem:[#allocation3 + $0x20] sm:$0xff]
  %v975 = vld [vmem:[#allocation3 + $0x28] sm:$0xff]
  %v976 = vld [vmem:[#allocation3 + $0x30] sm:$0xff]
  %v977 = vld [vmem:[#allocation3 + $0x38] sm:$0xff]
  %v978 = vpack.c.bf16 %v971, %v970
  %v979 = vpack.c.bf16 %v973, %v972
  %v980 = vpack.c.bf16 %v975, %v974
  %v981 = vpack.c.bf16 %v977, %v976
  %v982 = vpack.c.bf16 %v954, %v954
  %v983 = vld [vmem:[%s8] sm:$0xf]
  %v984 = vld [vmem:[%s8 + $0x4] sm:$0xf]
  %v985 = vld [vmem:[%s8 + $0x8] sm:$0xf]
  %v986 = vld [vmem:[%s8 + $0xc] sm:$0xf]
  %v987 = vld [vmem:[%s8 + $0x10] sm:$0xf]
  %v988 = vld [vmem:[%s8 + $0x14] sm:$0xf]
  %v989 = vld [vmem:[%s8 + $0x18] sm:$0xf]
  %v990 = vld [vmem:[%s8 + $0x1c] sm:$0xf]
  %v991 = vld [vmem:[%s8 + $0x20] sm:$0xf]
  %v992 = vld [vmem:[%s8 + $0x24] sm:$0xf]
  %v993 = vld [vmem:[%s8 + $0x28] sm:$0xf]
  %v994 = vld [vmem:[%s8 + $0x2c] sm:$0xf]
  %v995 = vld [vmem:[%s8 + $0x30] sm:$0xf]
  %v996 = vld [vmem:[%s8 + $0x34] sm:$0xf]
  %v997 = vld [vmem:[%s8 + $0x38] sm:$0xf]
  %v998 = vld [vmem:[%s8 + $0x3c] sm:$0xf]
  %v1015 = vunpack.c.l.b16 %v983
  %v1016 = vunpack.c.l.b16 %v984
  %v1017 = vunpack.c.l.b16 %v985
  %v1018 = vunpack.c.l.b16 %v986
  %v1019 = vunpack.c.l.b16 %v987
  %v1020 = vunpack.c.l.b16 %v988
  %v1021 = vunpack.c.l.b16 %v989
  %v1022 = vunpack.c.l.b16 %v990
  %v1023 = vunpack.c.l.b16 %v991
  %v1024 = vunpack.c.l.b16 %v992
  %v1025 = vunpack.c.l.b16 %v993
  %v1026 = vunpack.c.l.b16 %v994
  %v1027 = vunpack.c.l.b16 %v995
  %v1028 = vunpack.c.l.b16 %v996
  %v1029 = vunpack.c.l.b16 %v997
  %v1030 = vunpack.c.l.b16 %v998
  %v1031 = vpack.c.b16 %v1016, %v1015
  %v1032 = vpack.c.b16 %v1018, %v1017
  %v1033 = vpack.c.b16 %v1020, %v1019
  %v1034 = vpack.c.b16 %v1022, %v1021
  %v1035 = vpack.c.b16 %v1024, %v1023
  %v1036 = vpack.c.b16 %v1026, %v1025
  %v1037 = vpack.c.b16 %v1028, %v1027
  %v1038 = vpack.c.b16 %v1030, %v1029
  %1047 = vmatpush.bf16.msra.mxu0 %v1038
  %1048 = vmatpush.bf16.msra.mxu0 %v1037
  %1049 = vmatpush.bf16.msra.mxu0 %v1036
  %1050 = vmatpush.bf16.msra.mxu0 %v1035
  %1051 = vmatpush.bf16.msra.mxu0 %v1034
  %1052 = vmatpush.bf16.msra.mxu0 %v1033
  %1053 = vmatpush.bf16.msra.mxu0 %v1032
  %1054 = vmatpush.bf16.msra.mxu0 %v1031
  %1055 = vmatmul.bf16.gmra.mxu0 %v982
  %v1056 = vpop.f32.mrf.mxu0
  %v1057 = vadd.f32 0.0, %v1056
  %v1058 = vpop.f32.mrf.mxu0
  %1059 = vdwg.mxu0
  %v1060 = vld [vmem:[%s7] sm:$0xf]
  %v1061 = vld [vmem:[%s7 + $0x4] sm:$0xf]
  %v1062 = vld [vmem:[%s7 + $0x8] sm:$0xf]
  %v1063 = vld [vmem:[%s7 + $0xc] sm:$0xf]
  %v1066 = vunpack.c.l.b16 %v1062
  %v1067 = vunpack.c.l.b16 %v1063
  %v1068 = vpack.c.b16 %v1067, %v1066
  %v1071 = vsel %vm309, %v978, 0
  %v1074 = vsel %vm309, %v979, 0
  %v1077 = vsel %vm309, %v980, 0
  %v1080 = vsel %vm309, %v981, 0
  %1082 = vmatpush.bf16.msra.mxu0 0
  %1083 = vmatpush.bf16.msra.mxu0 0
  %1084 = vmatpush.bf16.msra.mxu0 0
  %1085 = vmatpush.bf16.msra.mxu0 0
  %1086 = vmatpush.bf16.msra.mxu0 0
  %1087 = vmatpush.bf16.msra.mxu0 0
  %1088 = vmatpush.bf16.msra.mxu0 0
  %1089 = vmatpush.bf16.msra.mxu0 %v1068
  %1090 = vmatmul.bf16.gmra.mxu0 %v1071
  %v1091 = vpop.f32.mrf.mxu0
  %v1092 = vadd.f32 0.0, %v1091
  %v1093 = vpop.f32.mrf.mxu0
  %v1094 = vadd.f32 0.0, %v1093
  %1095 = vmatmul.bf16.gmra.mxu0 %v1074
  %v1096 = vpop.f32.mrf.mxu0
  %v1097 = vadd.f32 0.0, %v1096
  %v1098 = vpop.f32.mrf.mxu0
  %v1099 = vadd.f32 0.0, %v1098
  %1100 = vmatmul.bf16.gmra.mxu0 %v1077
  %v1101 = vpop.f32.mrf.mxu0
  %v1102 = vadd.f32 0.0, %v1101
  %v1103 = vpop.f32.mrf.mxu0
  %v1104 = vadd.f32 0.0, %v1103
  %1105 = vmatmul.bf16.gmra.mxu0 %v1080
  %v1106 = vpop.f32.mrf.mxu0
  %v1107 = vadd.f32 0.0, %v1106
  %v1108 = vpop.f32.mrf.mxu0
  %v1109 = vadd.f32 0.0, %v1108
  %1110 = vdwg.mxu0
  %v1113 = vunpack.c.l.b16 %v1060
  %v1114 = vunpack.c.l.b16 %v1061
  %v1115 = vpack.c.b16 %v1114, %v1113
  %v1118 = vsel %vm309, %v966, 0
  %v1121 = vsel %vm309, %v967, 0
  %v1124 = vsel %vm309, %v968, 0
  %v1127 = vsel %vm309, %v969, 0
  %1129 = vmatpush.bf16.msra.mxu0 0
  %1130 = vmatpush.bf16.msra.mxu0 0
  %1131 = vmatpush.bf16.msra.mxu0 0
  %1132 = vmatpush.bf16.msra.mxu0 0
  %1133 = vmatpush.bf16.msra.mxu0 0
  %1134 = vmatpush.bf16.msra.mxu0 0
  %1135 = vmatpush.bf16.msra.mxu0 0
  %1136 = vmatpush.bf16.msra.mxu0 %v1115
  %1137 = vmatmul.bf16.gmra.mxu0 %v1118
  %v1138 = vpop.f32.mrf.mxu0
  %v1139 = vadd.f32 %v1092, %v1138
  %v1140 = vpop.f32.mrf.mxu0
  %v1141 = vadd.f32 %v1094, %v1140
  %1142 = vmatmul.bf16.gmra.mxu0 %v1121
  %v1143 = vpop.f32.mrf.mxu0
  %v1144 = vadd.f32 %v1097, %v1143
  %v1145 = vpop.f32.mrf.mxu0
  %v1146 = vadd.f32 %v1099, %v1145
  %1147 = vmatmul.bf16.gmra.mxu0 %v1124
  %v1148 = vpop.f32.mrf.mxu0
  %v1149 = vadd.f32 %v1102, %v1148
  %v1150 = vpop.f32.mrf.mxu0
  %v1151 = vadd.f32 %v1104, %v1150
  %1152 = vmatmul.bf16.gmra.mxu0 %v1127
  %v1153 = vpop.f32.mrf.mxu0
  %v1154 = vadd.f32 %v1107, %v1153
  %v1155 = vpop.f32.mrf.mxu0
  %v1156 = vadd.f32 %v1109, %v1155
  %1157 = vdwg.mxu0
  %v1158 = vld [vmem:[%s9] sm:$0x1]
  %v1160 = vperm.slane %v1158, 0
  %v1162 = vadd.f32 %v1139, %v1160
  %v1163 = vadd.f32 %v1141, %v1160
  %v1164 = vadd.f32 %v1144, %v1160
  %v1165 = vadd.f32 %v1146, %v1160
  %v1166 = vadd.f32 %v1149, %v1160
  %v1167 = vadd.f32 %v1151, %v1160
  %v1168 = vadd.f32 %v1154, %v1160
  %v1169 = vadd.f32 %v1156, %v1160
  %v1170 = vadd.f32 %v1162, %v1057
  %v1171 = vadd.f32 %v1163, %v1057
  %v1172 = vadd.f32 %v1164, %v1057
  %v1173 = vadd.f32 %v1165, %v1057
  %v1174 = vadd.f32 %v1166, %v1057
  %v1175 = vadd.f32 %v1167, %v1057
  %v1176 = vadd.f32 %v1168, %v1057
  %v1177 = vadd.f32 %v1169, %v1057
  %v1178 = vmax.f32 %v1170, 0.0
  %v1179 = vmax.f32 %v1171, 0.0
  %v1180 = vmax.f32 %v1172, 0.0
  %v1181 = vmax.f32 %v1173, 0.0
  %v1182 = vmax.f32 %v1174, 0.0
  %v1183 = vmax.f32 %v1175, 0.0
  %v1184 = vmax.f32 %v1176, 0.0
  %v1185 = vmax.f32 %v1177, 0.0
  %v1186 = vpack.c.bf16 %v1179, %v1178
  %v1187 = vpack.c.bf16 %v1181, %v1180
  %v1188 = vpack.c.bf16 %v1183, %v1182
  %v1189 = vpack.c.bf16 %v1185, %v1184
  %v1190 = vld [vmem:[%s10] sm:$0xf]
  %v1191 = vld [vmem:[%s10 + $0x4] sm:$0xf]
  %v1192 = vld [vmem:[%s10 + $0x8] sm:$0xf]
  %v1193 = vld [vmem:[%s10 + $0xc] sm:$0xf]
  %v1194 = vld [vmem:[%s10 + $0x10] sm:$0xf]
  %v1195 = vld [vmem:[%s10 + $0x14] sm:$0xf]
  %v1196 = vld [vmem:[%s10 + $0x18] sm:$0xf]
  %v1197 = vld [vmem:[%s10 + $0x1c] sm:$0xf]
  %v1198 = vld [vmem:[%s11] sm:$0x1]
  %v1200 = vperm.slane %v1198, 0
  %v1210 = vunpack.c.l.b16 %v1190
  %v1211 = vunpack.c.l.b16 %v1191
  %v1212 = vunpack.c.l.b16 %v1192
  %v1213 = vunpack.c.l.b16 %v1193
  %v1214 = vunpack.c.l.b16 %v1194
  %v1215 = vunpack.c.l.b16 %v1195
  %v1216 = vunpack.c.l.b16 %v1196
  %v1217 = vunpack.c.l.b16 %v1197
  %v1218 = vpack.c.b16 %v1211, %v1210
  %v1219 = vpack.c.b16 %v1213, %v1212
  %v1220 = vpack.c.b16 %v1215, %v1214
  %v1221 = vpack.c.b16 %v1217, %v1216
  %vm1226 = vcmask 523264
  %v1228 = vsel %vm1226, %v1186, 0
  %v1231 = vsel %vm1226, %v1187, 0
  %v1234 = vsel %vm1226, %v1188, 0
  %v1237 = vsel %vm1226, %v1189, 0
  %1239 = vmatpush.bf16.msra.mxu0 0
  %1240 = vmatpush.bf16.msra.mxu0 0
  %1241 = vmatpush.bf16.msra.mxu0 0
  %1242 = vmatpush.bf16.msra.mxu0 0
  %1243 = vmatpush.bf16.msra.mxu0 %v1221
  %1244 = vmatpush.bf16.msra.mxu0 %v1220
  %1245 = vmatpush.bf16.msra.mxu0 %v1219
  %1246 = vmatpush.bf16.msra.mxu0 %v1218
  %1247 = vmatmul.bf16.gmra.mxu0 %v1228
  %v1248 = vpop.f32.mrf.mxu0
  %v1249 = vadd.f32 %v1200, %v1248
  %v1250 = vpop.f32.mrf.mxu0
  %v1251 = vadd.f32 %v1200, %v1250
  %1252 = vmatmul.bf16.gmra.mxu0 %v1231
  %v1253 = vpop.f32.mrf.mxu0
  %v1254 = vadd.f32 %v1200, %v1253
  %v1255 = vpop.f32.mrf.mxu0
  %v1256 = vadd.f32 %v1200, %v1255
  %1257 = vmatmul.bf16.gmra.mxu0 %v1234
  %v1258 = vpop.f32.mrf.mxu0
  %v1259 = vadd.f32 %v1200, %v1258
  %v1260 = vpop.f32.mrf.mxu0
  %v1261 = vadd.f32 %v1200, %v1260
  %1262 = vmatmul.bf16.gmra.mxu0 %v1237
  %v1263 = vpop.f32.mrf.mxu0
  %v1264 = vadd.f32 %v1200, %v1263
  %v1265 = vpop.f32.mrf.mxu0
  %v1266 = vadd.f32 %v1200, %v1265
  %1267 = vdwg.mxu0
  %1268 = vst [vmem:[%s13] sm:$0xff] %v1249
  %1269 = vst [vmem:[%s13 + $0x8] sm:$0xff] %v1251
  %1270 = vst [vmem:[%s13 + $0x10] sm:$0xff] %v1254
  %1271 = vst [vmem:[%s13 + $0x18] sm:$0xff] %v1256
  %1272 = vst [vmem:[%s13 + $0x20] sm:$0xff] %v1259
  %1273 = vst [vmem:[%s13 + $0x28] sm:$0xff] %v1261
  %1274 = vst [vmem:[%s13 + $0x30] sm:$0xff] %v1264
  %1275 = vst [vmem:[%s13 + $0x38] sm:$0xff] %v1266
  // Predicated region
  $region50: #{joint_biaffine_forward.1} parent=0 // pred_check
    _
  $region51: #{joint_biaffine_forward.1} parent=0 // pred_check_branch
    %1277 = sbr.rel (0) target = $region53
  $region52: #{joint_biaffine_forward.1} parent=0 // pred_region
    _
  $region53: #{joint_biaffine_forward.1} parent=0 // pred_fallthru
    _
  // Predicated region
  $region54: #{joint_biaffine_forward.1} parent=0 // pred_check
    _
  $region55: #{joint_biaffine_forward.1} parent=0 // pred_check_branch
    %1279 = sbr.rel (0) target = $region57
  $region56: #{joint_biaffine_forward.1} parent=0 // pred_region
    _
  $region57: #{joint_biaffine_forward.1} parent=0 // pred_fallthru
    _
  // Predicated region
  $region58: #{joint_biaffine_forward.1} parent=0 // pred_check
    _
  $region59: #{joint_biaffine_forward.1} parent=0 // pred_check_branch
    %1281 = sbr.rel (0) target = $region61
  $region60: #{joint_biaffine_forward.1} parent=0 // pred_region
    _
  $region61: #{joint_biaffine_forward.1} parent=0 // pred_fallthru
    _
  // Predicated region
  $region62: #{joint_biaffine_forward.1} parent=0 // pred_check
    _
  $region63: #{joint_biaffine_forward.1} parent=0 // pred_check_branch
    %1283 = sbr.rel (0) target = $region65
  $region64: #{joint_biaffine_forward.1} parent=0 // pred_region
    _
  $region65: #{joint_biaffine_forward.1} parent=0 // pred_fallthru
    _

</llo_original>
